<compile_context>
chip_gen: v6e
topology: v6e:2x2x1
jax: 0.10.0
libtpu: 0.0.40
codegen_flags: <defaults>
</compile_context>

<pallas_src>
import math
import numpy as np
import jax
import jax.numpy as jnp
from jax.experimental import pallas as pl
from jax.experimental.pallas import tpu as pltpu

STATE_SIZE = 6
ACTION_SIZE = 1
H1, H2, HL, H4 = 64, 128, 64, 32          # linear1, linear2, LSTM hidden, linear4
SP = 8                                    # padded input lanes fed to linear1
OUT_LANES = 128                           # lane-dense packed output slab width
HEAD_LANES = 128                          # mu/sigma head weights padded to a full lane group
LOG_2PI = math.log(2.0 * math.pi)

# 128-lane-aligned offsets inside the packed f32 bias row (1, BIAS_LANES)
B1_OFF, B2_OFF, BG_OFF, B4_OFF, BH_OFF = 0, 128, 256, 512, 640
BIAS_LANES = 768

# bf16 weight slab layout: row offsets are multiples of 16 (one bf16 sublane tile),
# all sub-matrices start at lane 0.
ROW_W1, ROW_W2, ROW_WIH, ROW_WHH, ROW_W4, ROW_WHEAD = 0, 16, 80, 208, 272, 336
SLAB_ROWS, SLAB_LANES = 368, 256


def actor_kernel(state_ref, noise_ref, slab_ref, bias_ref, out_ref):
    T = state_ref.shape[0]
    f32, bf16 = jnp.float32, jnp.bfloat16

    # static, tile-aligned slices of the single bf16 weight slab (one input DMA)
    w1 = slab_ref[ROW_W1:ROW_W1 + SP, 0:H1]                   # (8, 64), rows 6..7 zero
    w2 = slab_ref[ROW_W2:ROW_W2 + H1, 0:H2]                   # (64, 128)
    wih = slab_ref[ROW_WIH:ROW_WIH + H2, 0:4 * HL]            # (128, 256) gate-permuted
    whh = slab_ref[ROW_WHH:ROW_WHH + HL, 0:4 * HL]            # (64, 256)  gate-permuted
    w4 = slab_ref[ROW_W4:ROW_W4 + HL, 0:H4]                   # (64, 32)
    whead = slab_ref[ROW_WHEAD:ROW_WHEAD + H4, 0:HEAD_LANES]  # (32, 128) col0=mu, col1=sig

    # static, 128-aligned slices of the packed f32 bias row
    b1 = bias_ref[:, B1_OFF:B1_OFF + H1]
    b2 = bias_ref[:, B2_OFF:B2_OFF + H2]
    bg = bias_ref[:, BG_OFF:BG_OFF + 4 * HL]          # bih + bhh, gate-permuted
    b4 = bias_ref[:, B4_OFF:B4_OFF + H4]
    bh = bias_ref[:, BH_OFF:BH_OFF + HEAD_LANES]      # lanes 0/1 = bmu/bsigma, rest zero

    # assemble the (T, SP) input slab in-kernel (no wrapper-side concat)
    x = jnp.concatenate(
        [state_ref[...], jnp.zeros((T, SP - STATE_SIZE), f32)], axis=1)

    # linear1 + relu : (T, 8) @ (8, 64), bf16 operands, f32 accumulation
    h1 = jnp.maximum(
        jnp.dot(x.astype(bf16), w1, preferred_element_type=f32) + b1, 0.0)
    # linear2 + relu : (T, 64) @ (64, 128)
    h2 = jnp.maximum(
        jnp.dot(h1.astype(bf16), w2, preferred_element_type=f32) + b2, 0.0)

    # LSTM (batch_first, batch=1, seq=T). Input contribution + folded biases precomputed.
    gates_x = jnp.dot(h2.astype(bf16), wih, preferred_element_type=f32) + bg   # (T, 4*HL)

    h = jnp.zeros((1, HL), f32)
    c = jnp.zeros((1, HL), f32)
    hs = []
    # TODO(synk): whh could be held resident in the MXU across the T serialized steps via
    # pltpu.matmul_push_rhs / matmul_acc_lhs / matmul_pop (split across two 128-wide MXUs
    # on v5e); kept as a bf16 jnp.dot for portability across v5e/v6e/v7x.
    for t in range(T):                                 # static unroll, T is small
        g = gates_x[t:t + 1, :] + jnp.dot(h.astype(bf16), whh,
                                          preferred_element_type=f32)
        # gates permuted at init to [i, f, o, g]; sigmoid as single-EUP tanh form
        sfo = 0.5 * (jnp.tanh(0.5 * g[:, 0:3 * HL]) + 1.0)
        gg = jnp.tanh(g[:, 3 * HL:4 * HL])
        i_g = sfo[:, 0:HL]
        f_g = sfo[:, HL:2 * HL]
        o_g = sfo[:, 2 * HL:3 * HL]
        c = f_g * c + i_g * gg
        h = o_g * jnp.tanh(c)
        hs.append(h)
    h3 = jnp.concatenate(hs, axis=0)                   # (T, HL) built in vregs, no scratch

    # linear4 + relu : (T, 64) @ (64, 32)
    h4 = jnp.maximum(
        jnp.dot(h3.astype(bf16), w4, preferred_element_type=f32) + b4, 0.0)

    # mu / sigma heads packed into one lane-padded matmul: (T, 32) @ (32, 128)
    head = jnp.dot(h4.astype(bf16), whead, preferred_element_type=f32) + bh
    mu = 2.0 * jnp.tanh(head[:, 0:1])
    sigma = jnp.maximum(head[:, 1:2], 0.0) + 0.001     # relu(.) + 0.001, variance of 1-d event

    # MultivariateNormal(diag_embed(mu), diag_embed(sigma)) with event dim 1
    eps = noise_ref[...]                               # (T, 1) standard normal
    action = mu + jnp.sqrt(sigma) * eps
    log_sigma = jnp.log(sigma)
    logprob = -0.5 * eps * eps - 0.5 * LOG_2PI - 0.5 * log_sigma
    ent_mean = jnp.sum(0.5 * (LOG_2PI + 1.0 + log_sigma), axis=0, keepdims=True) / T
    ent_col = jnp.broadcast_to(ent_mean, (T, 1))
    action_c = jnp.clip(action, -0.5, 0.8)

    # lane-dense (T, 128) output slab via lane-mask selects (VPU); single unmasked store:
    # lane 0 = clamped action, lane 1 = log_prob, lane 2 = mean entropy, rest zero
    lane = jax.lax.broadcasted_iota(jnp.int32, (T, OUT_LANES), 1)
    packed = jnp.where(lane == 0, action_c, 0.0)
    packed = jnp.where(lane == 1, logprob, packed)
    packed = jnp.where(lane == 2, ent_col, packed)
    out_ref[...] = packed


def prepare_params(params):
    """One-time static preprocessing (hoisted out of the per-call jit)."""
    # permute LSTM gate columns from torch order [i, f, g, o] to [i, f, o, g]
    perm = np.concatenate([np.arange(0, 2 * HL),
                           np.arange(3 * HL, 4 * HL),
                           np.arange(2 * HL, 3 * HL)])
    wih_p = params["wih"][:, perm]
    whh_p = params["whh"][:, perm]
    bg = (params["bih"] + params["bhh"])[:, perm]      # fold the two LSTM bias rows

    # pack all 6 weight matrices into one bf16, lane-0-aligned, 16-row-aligned slab
    slab = jnp.zeros((SLAB_ROWS, SLAB_LANES), jnp.float32)
    slab = slab.at[ROW_W1:ROW_W1 + STATE_SIZE, 0:H1].set(params["w1"])
    slab = slab.at[ROW_W2:ROW_W2 + H1, 0:H2].set(params["w2"])
    slab = slab.at[ROW_WIH:ROW_WIH + H2, 0:4 * HL].set(wih_p)
    slab = slab.at[ROW_WHH:ROW_WHH + HL, 0:4 * HL].set(whh_p)
    slab = slab.at[ROW_W4:ROW_W4 + HL, 0:H4].set(params["w4"])
    slab = slab.at[ROW_WHEAD:ROW_WHEAD + H4, 0:1].set(params["wmu"].T)
    slab = slab.at[ROW_WHEAD:ROW_WHEAD + H4, 1:2].set(params["wsig"].T)
    slab = slab.astype(jnp.bfloat16)

    # pack all bias rows into one 128-lane-aligned f32 row
    bias = jnp.zeros((1, BIAS_LANES), jnp.float32)
    bias = bias.at[:, B1_OFF:B1_OFF + H1].set(params["b1"])
    bias = bias.at[:, B2_OFF:B2_OFF + H2].set(params["b2"])
    bias = bias.at[:, BG_OFF:BG_OFF + 4 * HL].set(bg)
    bias = bias.at[:, B4_OFF:B4_OFF + H4].set(params["b4"])
    bias = bias.at[:, BH_OFF:BH_OFF + 1].set(params["bmu"])
    bias = bias.at[:, BH_OFF + 1:BH_OFF + 2].set(params["bsig"])

    return dict(slab=slab, bias=bias)


@jax.jit
def actor_forward(prepped, state, noise):
    T = state.shape[0]
    vmem = pl.BlockSpec(memory_space=pltpu.MemorySpace.VMEM)

    # TODO(synk): if multiple actors / sequences are processed per call, add a leading
    # batch grid axis with dimension_semantics=("parallel",) so v7x shards across its 2 TCs.
    out = pl.pallas_call(
        actor_kernel,
        out_shape=jax.ShapeDtypeStruct((T, OUT_LANES), jnp.float32),
        in_specs=[vmem, vmem, vmem, vmem],
        out_specs=vmem,
    )(state, noise, prepped["slab"], prepped["bias"])

    # match torch shapes: dist.sample() -> (T, 1, 1); log_prob -> (T, 1); entropy -> scalar
    action = out[:, 0].reshape(T, ACTION_SIZE, ACTION_SIZE)
    logprob = out[:, 1:2]
    entropy = out[0, 2]
    return action, logprob, entropy


def init_params(key):
    # Deterministic init mirroring torch's uniform(-1/sqrt(fan_in), 1/sqrt(fan_in)) scheme.
    # Weight matrices are stored PRE-TRANSPOSED as (in_features, out_features); LSTM gate
    # columns are in torch order [i, f, g, o] (permuted later by prepare_params).
    ks = jax.random.split(key, 14)

    def unif(k, shape, fan_in):
        bound = 1.0 / np.sqrt(fan_in)
        return jax.random.uniform(k, shape, jnp.float32, -bound, bound)

    return dict(
        w1=unif(ks[0], (STATE_SIZE, H1), STATE_SIZE), b1=unif(ks[1], (1, H1), STATE_SIZE),
        w2=unif(ks[2], (H1, H2), H1),                 b2=unif(ks[3], (1, H2), H1),
        wih=unif(ks[4], (H2, 4 * HL), HL),            bih=unif(ks[5], (1, 4 * HL), HL),
        whh=unif(ks[6], (HL, 4 * HL), HL),            bhh=unif(ks[7], (1, 4 * HL), HL),
        w4=unif(ks[8], (HL, H4), HL),                 b4=unif(ks[9], (1, H4), HL),
        wmu=unif(ks[10], (1, H4), H4),                bmu=unif(ks[11], (1, 1), H4),
        wsig=unif(ks[12], (1, H4), H4),               bsig=unif(ks[13], (1, 1), H4),
    )


if __name__ == "__main__":
    key = jax.random.PRNGKey(0)
    pkey, skey, nkey = jax.random.split(key, 3)
    params = init_params(pkey)
    prepped = prepare_params(params)        # one-time packing / permutation / bf16 cast

    T = 8                                   # sequence length (state rows)
    state = jax.random.normal(skey, (T, STATE_SIZE), jnp.float32)
    # TODO(synk): torch samples inside MultivariateNormal.sample(); RNG is supplied here as
    # externally generated standard-normal noise (reparameterized sample, same distribution).
    noise = jax.random.normal(nkey, (T, ACTION_SIZE), jnp.float32)

    action, logprob, entropy = actor_forward(prepped, state, noise)
    jax.block_until_ready((action, logprob, entropy))

    assert action.shape == (T, ACTION_SIZE, ACTION_SIZE)
    assert logprob.shape == (T, ACTION_SIZE)
    assert entropy.shape == ()
    assert bool(jnp.all(action >= -0.5)) and bool(jnp.all(action <= 0.8))
    assert bool(jnp.all(jnp.isfinite(logprob))) and bool(jnp.isfinite(entropy))
    print("KERNEL_OK")
</pallas_src>

<mosaic_0001>
module attributes {stable_mosaic.version = 11 : i64} {
  func.func @actor_kernel(%arg0: memref<8x6xf32, #tpu.memory_space<vmem>>, %arg1: memref<8x1xf32, #tpu.memory_space<vmem>>, %arg2: memref<368x256xbf16, #tpu.memory_space<vmem>>, %arg3: memref<1x768xf32, #tpu.memory_space<vmem>>, %arg4: memref<8x128xf32, #tpu.memory_space<vmem>>) attributes {dimension_semantics = [], scalar_prefetch = 0 : i64, scratch_operands = 0 : i64, tpu.core_type = #tpu.core_type<tc>} {
    %c0 = arith.constant 0 : index
    %c0_0 = arith.constant 0 : index
    %0 = vector.load %arg2[%c0, %c0_0] : memref<368x256xbf16, #tpu.memory_space<vmem>>, vector<8x64xbf16>
    %c16 = arith.constant 16 : index
    %c0_1 = arith.constant 0 : index
    %1 = vector.load %arg2[%c16, %c0_1] : memref<368x256xbf16, #tpu.memory_space<vmem>>, vector<64x128xbf16>
    %c80 = arith.constant 80 : index
    %c0_2 = arith.constant 0 : index
    %2 = vector.load %arg2[%c80, %c0_2] : memref<368x256xbf16, #tpu.memory_space<vmem>>, vector<128x256xbf16>
    %c208 = arith.constant 208 : index
    %c0_3 = arith.constant 0 : index
    %3 = vector.load %arg2[%c208, %c0_3] : memref<368x256xbf16, #tpu.memory_space<vmem>>, vector<64x256xbf16>
    %c272 = arith.constant 272 : index
    %c0_4 = arith.constant 0 : index
    %4 = vector.load %arg2[%c272, %c0_4] : memref<368x256xbf16, #tpu.memory_space<vmem>>, vector<64x32xbf16>
    %c336 = arith.constant 336 : index
    %c0_5 = arith.constant 0 : index
    %5 = vector.load %arg2[%c336, %c0_5] : memref<368x256xbf16, #tpu.memory_space<vmem>>, vector<32x128xbf16>
    %c0_6 = arith.constant 0 : index
    %c0_7 = arith.constant 0 : index
    %6 = vector.load %arg3[%c0_6, %c0_7] : memref<1x768xf32, #tpu.memory_space<vmem>>, vector<1x64xf32>
    %c0_8 = arith.constant 0 : index
    %c128 = arith.constant 128 : index
    %7 = vector.load %arg3[%c0_8, %c128] : memref<1x768xf32, #tpu.memory_space<vmem>>, vector<1x128xf32>
    %c0_9 = arith.constant 0 : index
    %c256 = arith.constant 256 : index
    %8 = vector.load %arg3[%c0_9, %c256] : memref<1x768xf32, #tpu.memory_space<vmem>>, vector<1x256xf32>
    %c0_10 = arith.constant 0 : index
    %c512 = arith.constant 512 : index
    %9 = vector.load %arg3[%c0_10, %c512] : memref<1x768xf32, #tpu.memory_space<vmem>>, vector<1x32xf32>
    %c0_11 = arith.constant 0 : index
    %c640 = arith.constant 640 : index
    %10 = vector.load %arg3[%c0_11, %c640] : memref<1x768xf32, #tpu.memory_space<vmem>>, vector<1x128xf32>
    %c0_12 = arith.constant 0 : index
    %c0_13 = arith.constant 0 : index
    %11 = vector.load %arg0[%c0_12, %c0_13] : memref<8x6xf32, #tpu.memory_space<vmem>>, vector<8x6xf32>
    %cst = arith.constant 0.000000e+00 : f32
    %12 = vector.broadcast %cst : f32 to vector<8x2xf32>
    %13 = tpu.concatenate %11, %12 in 1 : vector<8x6xf32>, vector<8x2xf32> -> vector<8x8xf32>
    %14 = arith.truncf %13 : vector<8x8xf32> to vector<8x8xbf16>
    %cst_14 = arith.constant dense<0.000000e+00> : vector<8x64xf32>
    %15 = tpu.matmul %14, %0, %cst_14 {dimension_numbers = #tpu.dot_dimension_numbers<[1], [0], [0], [1], [0, 0, 1, 1], [], []>} : vector<8x8xbf16>, vector<8x64xbf16>, vector<8x64xf32> -> vector<8x64xf32>
    %16 = vector.broadcast %6 : vector<1x64xf32> to vector<8x64xf32>
    %17 = arith.addf %15, %16 : vector<8x64xf32>
    %cst_15 = arith.constant 0.000000e+00 : f32
    %18 = vector.broadcast %cst_15 : f32 to vector<8x64xf32>
    %19 = arith.maximumf %17, %18 : vector<8x64xf32>
    %20 = arith.truncf %19 : vector<8x64xf32> to vector<8x64xbf16>
    %cst_16 = arith.constant dense<0.000000e+00> : vector<8x128xf32>
    %21 = tpu.matmul %20, %1, %cst_16 {dimension_numbers = #tpu.dot_dimension_numbers<[1], [0], [0], [1], [0, 0, 1, 1], [], []>} : vector<8x64xbf16>, vector<64x128xbf16>, vector<8x128xf32> -> vector<8x128xf32>
    %22 = vector.broadcast %7 : vector<1x128xf32> to vector<8x128xf32>
    %23 = arith.addf %21, %22 : vector<8x128xf32>
    %cst_17 = arith.constant 0.000000e+00 : f32
    %24 = vector.broadcast %cst_17 : f32 to vector<8x128xf32>
    %25 = arith.maximumf %23, %24 : vector<8x128xf32>
    %26 = arith.truncf %25 : vector<8x128xf32> to vector<8x128xbf16>
    %cst_18 = arith.constant dense<0.000000e+00> : vector<8x256xf32>
    %27 = tpu.matmul %26, %2, %cst_18 {dimension_numbers = #tpu.dot_dimension_numbers<[1], [0], [0], [1], [0, 0, 1, 1], [], []>} : vector<8x128xbf16>, vector<128x256xbf16>, vector<8x256xf32> -> vector<8x256xf32>
    %28 = vector.broadcast %8 : vector<1x256xf32> to vector<8x256xf32>
    %29 = arith.addf %27, %28 : vector<8x256xf32>
    %cst_19 = arith.constant 0.000000e+00 : f32
    %30 = vector.broadcast %cst_19 : f32 to vector<1x64xf32>
    %cst_20 = arith.constant 0.000000e+00 : f32
    %31 = vector.broadcast %cst_20 : f32 to vector<1x64xf32>
    %32 = vector.extract_strided_slice %29 {offsets = [0, 0], sizes = [1, 256], strides = [1, 1]} : vector<8x256xf32> to vector<1x256xf32>
    %33 = arith.truncf %30 : vector<1x64xf32> to vector<1x64xbf16>
    %cst_21 = arith.constant dense<0.000000e+00> : vector<1x256xf32>
    %34 = tpu.matmul %33, %3, %cst_21 {dimension_numbers = #tpu.dot_dimension_numbers<[1], [0], [0], [1], [0, 0, 1, 1], [], []>} : vector<1x64xbf16>, vector<64x256xbf16>, vector<1x256xf32> -> vector<1x256xf32>
    %35 = arith.addf %32, %34 : vector<1x256xf32>
    %36 = vector.extract_strided_slice %35 {offsets = [0, 0], sizes = [1, 192], strides = [1, 1]} : vector<1x256xf32> to vector<1x192xf32>
    %cst_22 = arith.constant 5.000000e-01 : f32
    %37 = vector.broadcast %cst_22 : f32 to vector<1x192xf32>
    %38 = arith.mulf %37, %36 : vector<1x192xf32>
    %39 = math.tanh %38 : vector<1x192xf32>
    %cst_23 = arith.constant 1.000000e+00 : f32
    %40 = vector.broadcast %cst_23 : f32 to vector<1x192xf32>
    %41 = arith.addf %39, %40 : vector<1x192xf32>
    %cst_24 = arith.constant 5.000000e-01 : f32
    %42 = vector.broadcast %cst_24 : f32 to vector<1x192xf32>
    %43 = arith.mulf %42, %41 : vector<1x192xf32>
    %44 = vector.extract_strided_slice %35 {offsets = [0, 192], sizes = [1, 64], strides = [1, 1]} : vector<1x256xf32> to vector<1x64xf32>
    %45 = math.tanh %44 : vector<1x64xf32>
    %46 = vector.extract_strided_slice %43 {offsets = [0, 0], sizes = [1, 64], strides = [1, 1]} : vector<1x192xf32> to vector<1x64xf32>
    %47 = vector.extract_strided_slice %43 {offsets = [0, 64], sizes = [1, 64], strides = [1, 1]} : vector<1x192xf32> to vector<1x64xf32>
    %48 = vector.extract_strided_slice %43 {offsets = [0, 128], sizes = [1, 64], strides = [1, 1]} : vector<1x192xf32> to vector<1x64xf32>
    %49 = arith.mulf %47, %31 : vector<1x64xf32>
    %50 = arith.mulf %46, %45 : vector<1x64xf32>
    %51 = arith.addf %49, %50 : vector<1x64xf32>
    %52 = math.tanh %51 : vector<1x64xf32>
    %53 = arith.mulf %48, %52 : vector<1x64xf32>
    %54 = vector.extract_strided_slice %29 {offsets = [1, 0], sizes = [1, 256], strides = [1, 1]} : vector<8x256xf32> to vector<1x256xf32>
    %55 = arith.truncf %53 : vector<1x64xf32> to vector<1x64xbf16>
    %cst_25 = arith.constant dense<0.000000e+00> : vector<1x256xf32>
    %56 = tpu.matmul %55, %3, %cst_25 {dimension_numbers = #tpu.dot_dimension_numbers<[1], [0], [0], [1], [0, 0, 1, 1], [], []>} : vector<1x64xbf16>, vector<64x256xbf16>, vector<1x256xf32> -> vector<1x256xf32>
    %57 = arith.addf %54, %56 : vector<1x256xf32>
    %58 = vector.extract_strided_slice %57 {offsets = [0, 0], sizes = [1, 192], strides = [1, 1]} : vector<1x256xf32> to vector<1x192xf32>
    %cst_26 = arith.constant 5.000000e-01 : f32
    %59 = vector.broadcast %cst_26 : f32 to vector<1x192xf32>
    %60 = arith.mulf %59, %58 : vector<1x192xf32>
    %61 = math.tanh %60 : vector<1x192xf32>
    %cst_27 = arith.constant 1.000000e+00 : f32
    %62 = vector.broadcast %cst_27 : f32 to vector<1x192xf32>
    %63 = arith.addf %61, %62 : vector<1x192xf32>
    %cst_28 = arith.constant 5.000000e-01 : f32
    %64 = vector.broadcast %cst_28 : f32 to vector<1x192xf32>
    %65 = arith.mulf %64, %63 : vector<1x192xf32>
    %66 = vector.extract_strided_slice %57 {offsets = [0, 192], sizes = [1, 64], strides = [1, 1]} : vector<1x256xf32> to vector<1x64xf32>
    %67 = math.tanh %66 : vector<1x64xf32>
    %68 = vector.extract_strided_slice %65 {offsets = [0, 0], sizes = [1, 64], strides = [1, 1]} : vector<1x192xf32> to vector<1x64xf32>
    %69 = vector.extract_strided_slice %65 {offsets = [0, 64], sizes = [1, 64], strides = [1, 1]} : vector<1x192xf32> to vector<1x64xf32>
    %70 = vector.extract_strided_slice %65 {offsets = [0, 128], sizes = [1, 64], strides = [1, 1]} : vector<1x192xf32> to vector<1x64xf32>
    %71 = arith.mulf %69, %51 : vector<1x64xf32>
    %72 = arith.mulf %68, %67 : vector<1x64xf32>
    %73 = arith.addf %71, %72 : vector<1x64xf32>
    %74 = math.tanh %73 : vector<1x64xf32>
    %75 = arith.mulf %70, %74 : vector<1x64xf32>
    %76 = vector.extract_strided_slice %29 {offsets = [2, 0], sizes = [1, 256], strides = [1, 1]} : vector<8x256xf32> to vector<1x256xf32>
    %77 = arith.truncf %75 : vector<1x64xf32> to vector<1x64xbf16>
    %cst_29 = arith.constant dense<0.000000e+00> : vector<1x256xf32>
    %78 = tpu.matmul %77, %3, %cst_29 {dimension_numbers = #tpu.dot_dimension_numbers<[1], [0], [0], [1], [0, 0, 1, 1], [], []>} : vector<1x64xbf16>, vector<64x256xbf16>, vector<1x256xf32> -> vector<1x256xf32>
    %79 = arith.addf %76, %78 : vector<1x256xf32>
    %80 = vector.extract_strided_slice %79 {offsets = [0, 0], sizes = [1, 192], strides = [1, 1]} : vector<1x256xf32> to vector<1x192xf32>
    %cst_30 = arith.constant 5.000000e-01 : f32
    %81 = vector.broadcast %cst_30 : f32 to vector<1x192xf32>
    %82 = arith.mulf %81, %80 : vector<1x192xf32>
    %83 = math.tanh %82 : vector<1x192xf32>
    %cst_31 = arith.constant 1.000000e+00 : f32
    %84 = vector.broadcast %cst_31 : f32 to vector<1x192xf32>
    %85 = arith.addf %83, %84 : vector<1x192xf32>
    %cst_32 = arith.constant 5.000000e-01 : f32
    %86 = vector.broadcast %cst_32 : f32 to vector<1x192xf32>
    %87 = arith.mulf %86, %85 : vector<1x192xf32>
    %88 = vector.extract_strided_slice %79 {offsets = [0, 192], sizes = [1, 64], strides = [1, 1]} : vector<1x256xf32> to vector<1x64xf32>
    %89 = math.tanh %88 : vector<1x64xf32>
    %90 = vector.extract_strided_slice %87 {offsets = [0, 0], sizes = [1, 64], strides = [1, 1]} : vector<1x192xf32> to vector<1x64xf32>
    %91 = vector.extract_strided_slice %87 {offsets = [0, 64], sizes = [1, 64], strides = [1, 1]} : vector<1x192xf32> to vector<1x64xf32>
    %92 = vector.extract_strided_slice %87 {offsets = [0, 128], sizes = [1, 64], strides = [1, 1]} : vector<1x192xf32> to vector<1x64xf32>
    %93 = arith.mulf %91, %73 : vector<1x64xf32>
    %94 = arith.mulf %90, %89 : vector<1x64xf32>
    %95 = arith.addf %93, %94 : vector<1x64xf32>
    %96 = math.tanh %95 : vector<1x64xf32>
    %97 = arith.mulf %92, %96 : vector<1x64xf32>
    %98 = vector.extract_strided_slice %29 {offsets = [3, 0], sizes = [1, 256], strides = [1, 1]} : vector<8x256xf32> to vector<1x256xf32>
    %99 = arith.truncf %97 : vector<1x64xf32> to vector<1x64xbf16>
    %cst_33 = arith.constant dense<0.000000e+00> : vector<1x256xf32>
    %100 = tpu.matmul %99, %3, %cst_33 {dimension_numbers = #tpu.dot_dimension_numbers<[1], [0], [0], [1], [0, 0, 1, 1], [], []>} : vector<1x64xbf16>, vector<64x256xbf16>, vector<1x256xf32> -> vector<1x256xf32>
    %101 = arith.addf %98, %100 : vector<1x256xf32>
    %102 = vector.extract_strided_slice %101 {offsets = [0, 0], sizes = [1, 192], strides = [1, 1]} : vector<1x256xf32> to vector<1x192xf32>
    %cst_34 = arith.constant 5.000000e-01 : f32
    %103 = vector.broadcast %cst_34 : f32 to vector<1x192xf32>
    %104 = arith.mulf %103, %102 : vector<1x192xf32>
    %105 = math.tanh %104 : vector<1x192xf32>
    %cst_35 = arith.constant 1.000000e+00 : f32
    %106 = vector.broadcast %cst_35 : f32 to vector<1x192xf32>
    %107 = arith.addf %105, %106 : vector<1x192xf32>
    %cst_36 = arith.constant 5.000000e-01 : f32
    %108 = vector.broadcast %cst_36 : f32 to vector<1x192xf32>
    %109 = arith.mulf %108, %107 : vector<1x192xf32>
    %110 = vector.extract_strided_slice %101 {offsets = [0, 192], sizes = [1, 64], strides = [1, 1]} : vector<1x256xf32> to vector<1x64xf32>
    %111 = math.tanh %110 : vector<1x64xf32>
    %112 = vector.extract_strided_slice %109 {offsets = [0, 0], sizes = [1, 64], strides = [1, 1]} : vector<1x192xf32> to vector<1x64xf32>
    %113 = vector.extract_strided_slice %109 {offsets = [0, 64], sizes = [1, 64], strides = [1, 1]} : vector<1x192xf32> to vector<1x64xf32>
    %114 = vector.extract_strided_slice %109 {offsets = [0, 128], sizes = [1, 64], strides = [1, 1]} : vector<1x192xf32> to vector<1x64xf32>
    %115 = arith.mulf %113, %95 : vector<1x64xf32>
    %116 = arith.mulf %112, %111 : vector<1x64xf32>
    %117 = arith.addf %115, %116 : vector<1x64xf32>
    %118 = math.tanh %117 : vector<1x64xf32>
    %119 = arith.mulf %114, %118 : vector<1x64xf32>
    %120 = vector.extract_strided_slice %29 {offsets = [4, 0], sizes = [1, 256], strides = [1, 1]} : vector<8x256xf32> to vector<1x256xf32>
    %121 = arith.truncf %119 : vector<1x64xf32> to vector<1x64xbf16>
    %cst_37 = arith.constant dense<0.000000e+00> : vector<1x256xf32>
    %122 = tpu.matmul %121, %3, %cst_37 {dimension_numbers = #tpu.dot_dimension_numbers<[1], [0], [0], [1], [0, 0, 1, 1], [], []>} : vector<1x64xbf16>, vector<64x256xbf16>, vector<1x256xf32> -> vector<1x256xf32>
    %123 = arith.addf %120, %122 : vector<1x256xf32>
    %124 = vector.extract_strided_slice %123 {offsets = [0, 0], sizes = [1, 192], strides = [1, 1]} : vector<1x256xf32> to vector<1x192xf32>
    %cst_38 = arith.constant 5.000000e-01 : f32
    %125 = vector.broadcast %cst_38 : f32 to vector<1x192xf32>
    %126 = arith.mulf %125, %124 : vector<1x192xf32>
    %127 = math.tanh %126 : vector<1x192xf32>
    %cst_39 = arith.constant 1.000000e+00 : f32
    %128 = vector.broadcast %cst_39 : f32 to vector<1x192xf32>
    %129 = arith.addf %127, %128 : vector<1x192xf32>
    %cst_40 = arith.constant 5.000000e-01 : f32
    %130 = vector.broadcast %cst_40 : f32 to vector<1x192xf32>
    %131 = arith.mulf %130, %129 : vector<1x192xf32>
    %132 = vector.extract_strided_slice %123 {offsets = [0, 192], sizes = [1, 64], strides = [1, 1]} : vector<1x256xf32> to vector<1x64xf32>
    %133 = math.tanh %132 : vector<1x64xf32>
    %134 = vector.extract_strided_slice %131 {offsets = [0, 0], sizes = [1, 64], strides = [1, 1]} : vector<1x192xf32> to vector<1x64xf32>
    %135 = vector.extract_strided_slice %131 {offsets = [0, 64], sizes = [1, 64], strides = [1, 1]} : vector<1x192xf32> to vector<1x64xf32>
    %136 = vector.extract_strided_slice %131 {offsets = [0, 128], sizes = [1, 64], strides = [1, 1]} : vector<1x192xf32> to vector<1x64xf32>
    %137 = arith.mulf %135, %117 : vector<1x64xf32>
    %138 = arith.mulf %134, %133 : vector<1x64xf32>
    %139 = arith.addf %137, %138 : vector<1x64xf32>
    %140 = math.tanh %139 : vector<1x64xf32>
    %141 = arith.mulf %136, %140 : vector<1x64xf32>
    %142 = vector.extract_strided_slice %29 {offsets = [5, 0], sizes = [1, 256], strides = [1, 1]} : vector<8x256xf32> to vector<1x256xf32>
    %143 = arith.truncf %141 : vector<1x64xf32> to vector<1x64xbf16>
    %cst_41 = arith.constant dense<0.000000e+00> : vector<1x256xf32>
    %144 = tpu.matmul %143, %3, %cst_41 {dimension_numbers = #tpu.dot_dimension_numbers<[1], [0], [0], [1], [0, 0, 1, 1], [], []>} : vector<1x64xbf16>, vector<64x256xbf16>, vector<1x256xf32> -> vector<1x256xf32>
    %145 = arith.addf %142, %144 : vector<1x256xf32>
    %146 = vector.extract_strided_slice %145 {offsets = [0, 0], sizes = [1, 192], strides = [1, 1]} : vector<1x256xf32> to vector<1x192xf32>
    %cst_42 = arith.constant 5.000000e-01 : f32
    %147 = vector.broadcast %cst_42 : f32 to vector<1x192xf32>
    %148 = arith.mulf %147, %146 : vector<1x192xf32>
    %149 = math.tanh %148 : vector<1x192xf32>
    %cst_43 = arith.constant 1.000000e+00 : f32
    %150 = vector.broadcast %cst_43 : f32 to vector<1x192xf32>
    %151 = arith.addf %149, %150 : vector<1x192xf32>
    %cst_44 = arith.constant 5.000000e-01 : f32
    %152 = vector.broadcast %cst_44 : f32 to vector<1x192xf32>
    %153 = arith.mulf %152, %151 : vector<1x192xf32>
    %154 = vector.extract_strided_slice %145 {offsets = [0, 192], sizes = [1, 64], strides = [1, 1]} : vector<1x256xf32> to vector<1x64xf32>
    %155 = math.tanh %154 : vector<1x64xf32>
    %156 = vector.extract_strided_slice %153 {offsets = [0, 0], sizes = [1, 64], strides = [1, 1]} : vector<1x192xf32> to vector<1x64xf32>
    %157 = vector.extract_strided_slice %153 {offsets = [0, 64], sizes = [1, 64], strides = [1, 1]} : vector<1x192xf32> to vector<1x64xf32>
    %158 = vector.extract_strided_slice %153 {offsets = [0, 128], sizes = [1, 64], strides = [1, 1]} : vector<1x192xf32> to vector<1x64xf32>
    %159 = arith.mulf %157, %139 : vector<1x64xf32>
    %160 = arith.mulf %156, %155 : vector<1x64xf32>
    %161 = arith.addf %159, %160 : vector<1x64xf32>
    %162 = math.tanh %161 : vector<1x64xf32>
    %163 = arith.mulf %158, %162 : vector<1x64xf32>
    %164 = vector.extract_strided_slice %29 {offsets = [6, 0], sizes = [1, 256], strides = [1, 1]} : vector<8x256xf32> to vector<1x256xf32>
    %165 = arith.truncf %163 : vector<1x64xf32> to vector<1x64xbf16>
    %cst_45 = arith.constant dense<0.000000e+00> : vector<1x256xf32>
    %166 = tpu.matmul %165, %3, %cst_45 {dimension_numbers = #tpu.dot_dimension_numbers<[1], [0], [0], [1], [0, 0, 1, 1], [], []>} : vector<1x64xbf16>, vector<64x256xbf16>, vector<1x256xf32> -> vector<1x256xf32>
    %167 = arith.addf %164, %166 : vector<1x256xf32>
    %168 = vector.extract_strided_slice %167 {offsets = [0, 0], sizes = [1, 192], strides = [1, 1]} : vector<1x256xf32> to vector<1x192xf32>
    %cst_46 = arith.constant 5.000000e-01 : f32
    %169 = vector.broadcast %cst_46 : f32 to vector<1x192xf32>
    %170 = arith.mulf %169, %168 : vector<1x192xf32>
    %171 = math.tanh %170 : vector<1x192xf32>
    %cst_47 = arith.constant 1.000000e+00 : f32
    %172 = vector.broadcast %cst_47 : f32 to vector<1x192xf32>
    %173 = arith.addf %171, %172 : vector<1x192xf32>
    %cst_48 = arith.constant 5.000000e-01 : f32
    %174 = vector.broadcast %cst_48 : f32 to vector<1x192xf32>
    %175 = arith.mulf %174, %173 : vector<1x192xf32>
    %176 = vector.extract_strided_slice %167 {offsets = [0, 192], sizes = [1, 64], strides = [1, 1]} : vector<1x256xf32> to vector<1x64xf32>
    %177 = math.tanh %176 : vector<1x64xf32>
    %178 = vector.extract_strided_slice %175 {offsets = [0, 0], sizes = [1, 64], strides = [1, 1]} : vector<1x192xf32> to vector<1x64xf32>
    %179 = vector.extract_strided_slice %175 {offsets = [0, 64], sizes = [1, 64], strides = [1, 1]} : vector<1x192xf32> to vector<1x64xf32>
    %180 = vector.extract_strided_slice %175 {offsets = [0, 128], sizes = [1, 64], strides = [1, 1]} : vector<1x192xf32> to vector<1x64xf32>
    %181 = arith.mulf %179, %161 : vector<1x64xf32>
    %182 = arith.mulf %178, %177 : vector<1x64xf32>
    %183 = arith.addf %181, %182 : vector<1x64xf32>
    %184 = math.tanh %183 : vector<1x64xf32>
    %185 = arith.mulf %180, %184 : vector<1x64xf32>
    %186 = vector.extract_strided_slice %29 {offsets = [7, 0], sizes = [1, 256], strides = [1, 1]} : vector<8x256xf32> to vector<1x256xf32>
    %187 = arith.truncf %185 : vector<1x64xf32> to vector<1x64xbf16>
    %cst_49 = arith.constant dense<0.000000e+00> : vector<1x256xf32>
    %188 = tpu.matmul %187, %3, %cst_49 {dimension_numbers = #tpu.dot_dimension_numbers<[1], [0], [0], [1], [0, 0, 1, 1], [], []>} : vector<1x64xbf16>, vector<64x256xbf16>, vector<1x256xf32> -> vector<1x256xf32>
    %189 = arith.addf %186, %188 : vector<1x256xf32>
    %190 = vector.extract_strided_slice %189 {offsets = [0, 0], sizes = [1, 192], strides = [1, 1]} : vector<1x256xf32> to vector<1x192xf32>
    %cst_50 = arith.constant 5.000000e-01 : f32
    %191 = vector.broadcast %cst_50 : f32 to vector<1x192xf32>
    %192 = arith.mulf %191, %190 : vector<1x192xf32>
    %193 = math.tanh %192 : vector<1x192xf32>
    %cst_51 = arith.constant 1.000000e+00 : f32
    %194 = vector.broadcast %cst_51 : f32 to vector<1x192xf32>
    %195 = arith.addf %193, %194 : vector<1x192xf32>
    %cst_52 = arith.constant 5.000000e-01 : f32
    %196 = vector.broadcast %cst_52 : f32 to vector<1x192xf32>
    %197 = arith.mulf %196, %195 : vector<1x192xf32>
    %198 = vector.extract_strided_slice %189 {offsets = [0, 192], sizes = [1, 64], strides = [1, 1]} : vector<1x256xf32> to vector<1x64xf32>
    %199 = math.tanh %198 : vector<1x64xf32>
    %200 = vector.extract_strided_slice %197 {offsets = [0, 0], sizes = [1, 64], strides = [1, 1]} : vector<1x192xf32> to vector<1x64xf32>
    %201 = vector.extract_strided_slice %197 {offsets = [0, 64], sizes = [1, 64], strides = [1, 1]} : vector<1x192xf32> to vector<1x64xf32>
    %202 = vector.extract_strided_slice %197 {offsets = [0, 128], sizes = [1, 64], strides = [1, 1]} : vector<1x192xf32> to vector<1x64xf32>
    %203 = arith.mulf %201, %183 : vector<1x64xf32>
    %204 = arith.mulf %200, %199 : vector<1x64xf32>
    %205 = arith.addf %203, %204 : vector<1x64xf32>
    %206 = math.tanh %205 : vector<1x64xf32>
    %207 = arith.mulf %202, %206 : vector<1x64xf32>
    %208 = tpu.concatenate %53, %75, %97, %119, %141, %163, %185, %207 in 0 : vector<1x64xf32>, vector<1x64xf32>, vector<1x64xf32>, vector<1x64xf32>, vector<1x64xf32>, vector<1x64xf32>, vector<1x64xf32>, vector<1x64xf32> -> vector<8x64xf32>
    %209 = arith.truncf %208 : vector<8x64xf32> to vector<8x64xbf16>
    %cst_53 = arith.constant dense<0.000000e+00> : vector<8x32xf32>
    %210 = tpu.matmul %209, %4, %cst_53 {dimension_numbers = #tpu.dot_dimension_numbers<[1], [0], [0], [1], [0, 0, 1, 1], [], []>} : vector<8x64xbf16>, vector<64x32xbf16>, vector<8x32xf32> -> vector<8x32xf32>
    %211 = vector.broadcast %9 : vector<1x32xf32> to vector<8x32xf32>
    %212 = arith.addf %210, %211 : vector<8x32xf32>
    %cst_54 = arith.constant 0.000000e+00 : f32
    %213 = vector.broadcast %cst_54 : f32 to vector<8x32xf32>
    %214 = arith.maximumf %212, %213 : vector<8x32xf32>
    %215 = arith.truncf %214 : vector<8x32xf32> to vector<8x32xbf16>
    %cst_55 = arith.constant dense<0.000000e+00> : vector<8x128xf32>
    %216 = tpu.matmul %215, %5, %cst_55 {dimension_numbers = #tpu.dot_dimension_numbers<[1], [0], [0], [1], [0, 0, 1, 1], [], []>} : vector<8x32xbf16>, vector<32x128xbf16>, vector<8x128xf32> -> vector<8x128xf32>
    %217 = vector.broadcast %10 : vector<1x128xf32> to vector<8x128xf32>
    %218 = arith.addf %216, %217 : vector<8x128xf32>
    %219 = vector.extract_strided_slice %218 {offsets = [0, 0], sizes = [8, 1], strides = [1, 1]} : vector<8x128xf32> to vector<8x1xf32>
    %220 = math.tanh %219 : vector<8x1xf32>
    %cst_56 = arith.constant 2.000000e+00 : f32
    %221 = vector.broadcast %cst_56 : f32 to vector<8x1xf32>
    %222 = arith.mulf %221, %220 : vector<8x1xf32>
    %223 = vector.extract_strided_slice %218 {offsets = [0, 1], sizes = [8, 1], strides = [1, 1]} : vector<8x128xf32> to vector<8x1xf32>
    %cst_57 = arith.constant 0.000000e+00 : f32
    %224 = vector.broadcast %cst_57 : f32 to vector<8x1xf32>
    %225 = arith.maximumf %223, %224 : vector<8x1xf32>
    %cst_58 = arith.constant 1.000000e-03 : f32
    %226 = vector.broadcast %cst_58 : f32 to vector<8x1xf32>
    %227 = arith.addf %225, %226 : vector<8x1xf32>
    %c0_59 = arith.constant 0 : index
    %c0_60 = arith.constant 0 : index
    %228 = vector.load %arg1[%c0_59, %c0_60] : memref<8x1xf32, #tpu.memory_space<vmem>>, vector<8x1xf32>
    %229 = math.sqrt %227 : vector<8x1xf32>
    %230 = arith.mulf %229, %228 : vector<8x1xf32>
    %231 = arith.addf %222, %230 : vector<8x1xf32>
    %232 = math.log %227 : vector<8x1xf32>
    %cst_61 = arith.constant -5.000000e-01 : f32
    %233 = vector.broadcast %cst_61 : f32 to vector<8x1xf32>
    %234 = arith.mulf %233, %228 : vector<8x1xf32>
    %235 = arith.mulf %234, %228 : vector<8x1xf32>
    %cst_62 = arith.constant 0.918938517 : f32
    %236 = vector.broadcast %cst_62 : f32 to vector<8x1xf32>
    %237 = arith.subf %235, %236 : vector<8x1xf32>
    %cst_63 = arith.constant 5.000000e-01 : f32
    %238 = vector.broadcast %cst_63 : f32 to vector<8x1xf32>
    %239 = arith.mulf %238, %232 : vector<8x1xf32>
    %240 = arith.subf %237, %239 : vector<8x1xf32>
    %cst_64 = arith.constant 2.83787704 : f32
    %241 = vector.broadcast %cst_64 : f32 to vector<8x1xf32>
    %242 = arith.addf %241, %232 : vector<8x1xf32>
    %cst_65 = arith.constant 5.000000e-01 : f32
    %243 = vector.broadcast %cst_65 : f32 to vector<8x1xf32>
    %244 = arith.mulf %243, %242 : vector<8x1xf32>
    %cst_66 = arith.constant dense<0.000000e+00> : vector<1xf32>
    %245 = vector.multi_reduction <add>, %244, %cst_66 [0] : vector<8x1xf32> to vector<1xf32>
    %246 = vector.shape_cast %245 : vector<1xf32> to vector<1x1xf32>
    %cst_67 = arith.constant 8.000000e+00 : f32
    %247 = vector.broadcast %cst_67 : f32 to vector<1x1xf32>
    %248 = arith.divf %246, %247 : vector<1x1xf32>
    %249 = vector.shape_cast %248 : vector<1x1xf32> to vector<1x1xf32>
    %250 = vector.broadcast %249 : vector<1x1xf32> to vector<8x1xf32>
    %cst_68 = arith.constant -5.000000e-01 : f32
    %cst_69 = arith.constant 8.000000e-01 : f32
    %251 = vector.broadcast %cst_68 : f32 to vector<8x1xf32>
    %252 = arith.maximumf %251, %231 : vector<8x1xf32>
    %253 = vector.broadcast %cst_69 : f32 to vector<8x1xf32>
    %254 = arith.minimumf %253, %252 : vector<8x1xf32>
    %255 = tpu.iota {dimensions = array<i32: 1>} : vector<8x128xi32>
    %c0_i32 = arith.constant 0 : i32
    %256 = vector.broadcast %c0_i32 : i32 to vector<8x128xi32>
    %257 = arith.cmpi eq, %255, %256 : vector<8x128xi32>
    %cst_70 = arith.constant 0.000000e+00 : f32
    %258 = vector.shape_cast %254 : vector<8x1xf32> to vector<8x1xf32>
    %259 = vector.broadcast %258 : vector<8x1xf32> to vector<8x128xf32>
    %260 = vector.broadcast %cst_70 : f32 to vector<8x128xf32>
    %261 = arith.select %257, %259, %260 : vector<8x128xi1>, vector<8x128xf32>
    %c1_i32 = arith.constant 1 : i32
    %262 = vector.broadcast %c1_i32 : i32 to vector<8x128xi32>
    %263 = arith.cmpi eq, %255, %262 : vector<8x128xi32>
    %264 = vector.shape_cast %240 : vector<8x1xf32> to vector<8x1xf32>
    %265 = vector.broadcast %264 : vector<8x1xf32> to vector<8x128xf32>
    %266 = arith.select %263, %265, %261 : vector<8x128xi1>, vector<8x128xf32>
    %c2_i32 = arith.constant 2 : i32
    %267 = vector.broadcast %c2_i32 : i32 to vector<8x128xi32>
    %268 = arith.cmpi eq, %255, %267 : vector<8x128xi32>
    %269 = vector.shape_cast %250 : vector<8x1xf32> to vector<8x1xf32>
    %270 = vector.broadcast %269 : vector<8x1xf32> to vector<8x128xf32>
    %271 = arith.select %268, %270, %266 : vector<8x128xi1>, vector<8x128xf32>
    %c0_71 = arith.constant 0 : index
    %c0_72 = arith.constant 0 : index
    %272 = vector.load %arg4[%c0_71, %c0_72] : memref<8x128xf32, #tpu.memory_space<vmem>>, vector<8x128xf32>
    tpu.vector_store %arg4[%c0_71, %c0_72], %271 {strides = array<i32>} : memref<8x128xf32, #tpu.memory_space<vmem>>, vector<8x128xf32>,
    return
  }
}

</mosaic_0001>

<llo_original>
// kernel: actor_forward.1
$region0: #{actor_forward.1}
  #allocation0 [shape = 'u32[]', space=smem, size = 0x4, offset = 0x4, fixed_abs, tag = 'smem constant byte address 0x4 - core index']
  #allocation1 [shape = 'u32[144,128]{1,0:T(1,128)}', space=vmem, size = 0x12000, scoped, tag = 'internal scratch']
  %s0 = inlined_call_operand.vmem [shape: f32[8,6], index: 0, kind: input, shape index: {}]
  %s1 = inlined_call_operand.vmem [shape: f32[8,1], index: 1, kind: input, shape index: {}]
  %s2 = inlined_call_operand.hbm [shape: bf16[368,256], index: 2, kind: input, shape index: {}]
  %s3 = inlined_call_operand.vmem [shape: f32[1,768], index: 3, kind: input, shape index: {}]
  %s4 = inlined_call_operand.vmem [shape: f32[8,128], index: 4, kind: output, shape index: {}]
  %s5 = sld [smem:[#allocation0]]
  $region30: #{actor_forward.1} parent=0
    _
  %s7 = ssub.s32 1, %s5
  %s8 = scalar_select 0, %s7, %s5
  $region1: #{actor_forward.1} parent=0
    #allocation2 [shape = 'u8[188416]{0}', space=vmem, size = 0x2e000, scoped, tag = 'input window, operand 2, single buffered']
    #allocation3 [shape = 's32[1]{0}', space=sflag, size = 0x4, scoped, tag = 'scoped memory for actor_forward.1']
    %9 = vsyncpa [#allocation3], 0
    // Predicated region
    $region2: #{actor_forward.1} parent=1 // pred_check
      _
    $region3: #{actor_forward.1} parent=1 // pred_check_branch
      %11 = sbr.rel (0) target = $region5
    $region4: #{actor_forward.1} parent=1 // pred_region
      _
    $region5: #{actor_forward.1} parent=1 // pred_fallthru
      _
    // Predicated region
    $region6: #{actor_forward.1} parent=1 // pred_check
      _
    $region7: #{actor_forward.1} parent=1 // pred_check_branch
      %13 = sbr.rel (0) target = $region9
    $region8: #{actor_forward.1} parent=1 // pred_region
      _
    $region9: #{actor_forward.1} parent=1 // pred_fallthru
      _
    // Predicated region
    $region10: #{actor_forward.1} parent=1 // pred_check
      _
    $region11: #{actor_forward.1} parent=1 // pred_check_branch
      %15 = sbr.rel (0) target = $region13
    $region12: #{actor_forward.1} parent=1 // pred_region
      %s17 = ssub.s32 5888, 5888
      %18 = vsyncadd [#allocation3], %s17
      %s19 = sshll.u32 [#allocation2], 4
      %s20 = int_to_ptr.vmem [resolvable:$true] %s19
      %25 = dma.hbm_to_vmem [thread:$0]  %s2, 5888, %s20, [#allocation3], 128, 128, 8
    $region13: #{actor_forward.1} parent=1 // pred_fallthru
      _
    // Predicated region
    $region14: #{actor_forward.1} parent=1 // pred_check
      _
    $region15: #{actor_forward.1} parent=1 // pred_check_branch
      %27 = sbr.rel (0) target = $region17
    $region16: #{actor_forward.1} parent=1 // pred_region
      _
    $region17: #{actor_forward.1} parent=1 // pred_fallthru
      _
    // Predicated region
    $region18: #{actor_forward.1} parent=1 // pred_check
      _
    $region19: #{actor_forward.1} parent=1 // pred_check_branch
      %29 = sbr.rel (0) target = $region21
    $region20: #{actor_forward.1} parent=1 // pred_region
      %30 = dma.done [#allocation3], 5888
    $region21: #{actor_forward.1} parent=1 // pred_fallthru
      _
    %v32 = vld [vmem:[#allocation2] sm:$0xf]
    %v33 = vld [vmem:[#allocation2 + $0x10] sm:$0xf]
    %v34 = vld [vmem:[#allocation2 + $0x18] sm:$0xf]
    %v35 = vld [vmem:[#allocation2 + $0x20] sm:$0xf]
    %v36 = vld [vmem:[#allocation2 + $0x28] sm:$0xf]
    %v37 = vld [vmem:[#allocation2 + $0x30] sm:$0xf]
    %v38 = vld [vmem:[#allocation2 + $0x38] sm:$0xf]
    %v39 = vld [vmem:[#allocation2 + $0x40] sm:$0xf]
    %v40 = vld [vmem:[#allocation2 + $0x48] sm:$0xf]
    %v41 = vld [vmem:[#allocation2 + $0x50] sm:$0xff]
    %v42 = vld [vmem:[#allocation2 + $0x58] sm:$0xff]
    %v43 = vld [vmem:[#allocation2 + $0x60] sm:$0xff]
    %v44 = vld [vmem:[#allocation2 + $0x68] sm:$0xff]
    %v45 = vld [vmem:[#allocation2 + $0x70] sm:$0xff]
    %v46 = vld [vmem:[#allocation2 + $0x78] sm:$0xff]
    %v47 = vld [vmem:[#allocation2 + $0x80] sm:$0xff]
    %v48 = vld [vmem:[#allocation2 + $0x88] sm:$0xff]
    %v49 = vld [vmem:[#allocation2 + $0x90] sm:$0xff]
    %v50 = vld [vmem:[#allocation2 + $0x98] sm:$0xff]
    %v51 = vld [vmem:[#allocation2 + $0xa0] sm:$0xff]
    %v52 = vld [vmem:[#allocation2 + $0xa8] sm:$0xff]
    %v53 = vld [vmem:[#allocation2 + $0xb0] sm:$0xff]
    %v54 = vld [vmem:[#allocation2 + $0xb8] sm:$0xff]
    %v55 = vld [vmem:[#allocation2 + $0xc0] sm:$0xff]
    %v56 = vld [vmem:[#allocation2 + $0xc8] sm:$0xff]
    %v57 = vld [vmem:[#allocation2 + $0xd0] sm:$0xff]
    %v58 = vld [vmem:[#allocation2 + $0xd8] sm:$0xff]
    %v59 = vld [vmem:[#allocation2 + $0xe0] sm:$0xff]
    %v60 = vld [vmem:[#allocation2 + $0xe8] sm:$0xff]
    %v61 = vld [vmem:[#allocation2 + $0xf0] sm:$0xff]
    %v62 = vld [vmem:[#allocation2 + $0xf8] sm:$0xff]
    %v63 = vld [vmem:[#allocation2 + $0x100] sm:$0xff]
    %v64 = vld [vmem:[#allocation2 + $0x108] sm:$0xff]
    %v65 = vld [vmem:[#allocation2 + $0x110] sm:$0xf]
    %v66 = vld [vmem:[#allocation2 + $0x118] sm:$0xf]
    %v67 = vld [vmem:[#allocation2 + $0x120] sm:$0xf]
    %v68 = vld [vmem:[#allocation2 + $0x128] sm:$0xf]
    %v69 = vld [vmem:[#allocation2 + $0x130] sm:$0xf]
    %v70 = vld [vmem:[#allocation2 + $0x138] sm:$0xf]
    %v71 = vld [vmem:[#allocation2 + $0x140] sm:$0xf]
    %v72 = vld [vmem:[#allocation2 + $0x148] sm:$0xf]
    %v73 = vld [vmem:[#allocation2 + $0x150] sm:$0xf]
    %v74 = vld [vmem:[#allocation2 + $0x158] sm:$0xf]
    %v75 = vld [vmem:[#allocation2 + $0x160] sm:$0xf]
    %v76 = vld [vmem:[#allocation2 + $0x168] sm:$0xf]
    %v77 = vld [vmem:[%s3] sm:$0x1]
    %v78 = vld [vmem:[%s3 + $0x1] sm:$0x1]
    %v79 = vld [vmem:[%s3 + $0x2] sm:$0x3]
    %v80 = vld [vmem:[%s3 + $0x4] sm:$0x1]
    %v81 = vld [vmem:[%s3 + $0x5] sm:$0x1]
    %v82 = vld [vmem:[%s0] sm:$0xff]
    %vm83 = vcmask 48128
    %v84 = vsel %vm83, %v82, 0.0
    %v85 = vpack.c.bf16 %v84, %v84
    %v87 = vlaneseq
    %v88 = vshrl.u32 %v87, 7
    %v89 = vsub.s32 0, %v88
    %v90 = vrot.slane %v77, %v89
    %vm92 = vcmask 64512
    %v94 = vsel %vm92, %v85, 0
    %vm96 = vcmask 1043456
    %v98 = vsel %vm96, %v32, 0
    %100 = vmatprep.subr.bf16.mxu0 0
    %101 = vmatpush1.bf16.msra.mxu0 0
    %102 = vmatprep.subr.bf16.mxu0 0
    %103 = vmatpush1.bf16.msra.mxu0 0
    %104 = vmatprep.subr.bf16.mxu0 0
    %105 = vmatpush1.bf16.msra.mxu0 0
    %106 = vmatprep.subr.bf16.mxu0 0
    %107 = vmatpush1.bf16.msra.mxu0 0
    %108 = vmatprep.subr.bf16.mxu0 0
    %109 = vmatpush1.bf16.msra.mxu0 0
    %110 = vmatprep.subr.bf16.mxu0 0
    %111 = vmatpush1.bf16.msra.mxu0 0
    %112 = vmatprep.subr.bf16.mxu0 0
    %113 = vmatpush1.bf16.msra.mxu0 0
    %114 = vmatprep.subr.bf16.mxu0 0
    %115 = vmatpush1.bf16.msra.mxu0 %v98
    %116 = vmatprep.subr.bf16.mxu0 0
    %117 = vmatpush2.bf16.msra.mxu0 0
    %118 = vmatprep.subr.bf16.mxu0 0
    %119 = vmatpush2.bf16.msra.mxu0 0
    %120 = vmatprep.subr.bf16.mxu0 0
    %121 = vmatpush2.bf16.msra.mxu0 0
    %122 = vmatprep.subr.bf16.mxu0 0
    %123 = vmatpush2.bf16.msra.mxu0 0
    %124 = vmatprep.subr.bf16.mxu0 0
    %125 = vmatpush2.bf16.msra.mxu0 0
    %126 = vmatprep.subr.bf16.mxu0 0
    %127 = vmatpush2.bf16.msra.mxu0 0
    %128 = vmatprep.subr.bf16.mxu0 0
    %129 = vmatpush2.bf16.msra.mxu0 0
    %130 = vmatprep.subr.bf16.mxu0 0
    %131 = vmatpush2.bf16.msra.mxu0 0
    %132 = vmatprep.mubr.bf16.mxu0 0
    %133 = vmatmul.mubr.bf16.gmra.mxu0 %v94
    %v134 = vpop.f32.mrf.mxu0
    %v135 = vadd.f32 %v90, %v134
    %v136 = vpop.f32.mrf.mxu0
    %v137 = vpop.f32.mrf.mxu0
    %v138 = vpop.f32.mrf.mxu0
    %139 = vdwg.mxu0
    %v140 = vmax.f32 %v135, 0.0
    %v141 = vpack.c.bf16 %v140, %v140
    %v143 = vlaneseq
    %v144 = vshrl.u32 %v143, 7
    %v145 = vsub.s32 0, %v144
    %v146 = vrot.slane %v78, %v145
    %v156 = vunpack.c.l.b16 %v33
    %v157 = vunpack.c.l.b16 %v34
    %v158 = vunpack.c.l.b16 %v35
    %v159 = vunpack.c.l.b16 %v36
    %v160 = vunpack.c.l.b16 %v37
    %v161 = vunpack.c.l.b16 %v38
    %v162 = vunpack.c.l.b16 %v39
    %v163 = vunpack.c.l.b16 %v40
    %v164 = vpack.c.b16 %v157, %v156
    %v165 = vpack.c.b16 %v159, %v158
    %v166 = vpack.c.b16 %v161, %v160
    %v167 = vpack.c.b16 %v163, %v162
    %vm172 = vcmask 523264
    %v174 = vsel %vm172, %v141, 0
    %176 = vmatprep.subr.bf16.mxu0 0
    %177 = vmatpush1.bf16.msra.mxu0 0
    %178 = vmatprep.subr.bf16.mxu0 0
    %179 = vmatpush1.bf16.msra.mxu0 0
    %180 = vmatprep.subr.bf16.mxu0 0
    %181 = vmatpush1.bf16.msra.mxu0 0
    %182 = vmatprep.subr.bf16.mxu0 0
    %183 = vmatpush1.bf16.msra.mxu0 0
    %184 = vmatprep.subr.bf16.mxu0 0
    %185 = vmatpush1.bf16.msra.mxu0 %v167
    %186 = vmatprep.subr.bf16.mxu0 0
    %187 = vmatpush1.bf16.msra.mxu0 %v166
    %188 = vmatprep.subr.bf16.mxu0 0
    %189 = vmatpush1.bf16.msra.mxu0 %v165
    %190 = vmatprep.subr.bf16.mxu0 0
    %191 = vmatpush1.bf16.msra.mxu0 %v164
    %192 = vmatprep.subr.bf16.mxu0 0
    %193 = vmatpush2.bf16.msra.mxu0 0
    %194 = vmatprep.subr.bf16.mxu0 0
    %195 = vmatpush2.bf16.msra.mxu0 0
    %196 = vmatprep.subr.bf16.mxu0 0
    %197 = vmatpush2.bf16.msra.mxu0 0
    %198 = vmatprep.subr.bf16.mxu0 0
    %199 = vmatpush2.bf16.msra.mxu0 0
    %200 = vmatprep.subr.bf16.mxu0 0
    %201 = vmatpush2.bf16.msra.mxu0 0
    %202 = vmatprep.subr.bf16.mxu0 0
    %203 = vmatpush2.bf16.msra.mxu0 0
    %204 = vmatprep.subr.bf16.mxu0 0
    %205 = vmatpush2.bf16.msra.mxu0 0
    %206 = vmatprep.subr.bf16.mxu0 0
    %207 = vmatpush2.bf16.msra.mxu0 0
    %208 = vmatprep.mubr.bf16.mxu0 0
    %209 = vmatmul.mubr.bf16.gmra.mxu0 %v174
    %v210 = vpop.f32.mrf.mxu0
    %v211 = vadd.f32 %v146, %v210
    %v212 = vpop.f32.mrf.mxu0
    %v213 = vpop.f32.mrf.mxu0
    %v214 = vpop.f32.mrf.mxu0
    %215 = vdwg.mxu0
    %v216 = vmax.f32 %v211, 0.0
    %v217 = vpack.c.bf16 %v216, %v216
    %v219 = vlaneseq
    %v220 = vshrl.u32 %v219, 7
    %v221 = vsub.s32 0, %v220
    %v222 = vrot.slane %v79, %v221
    %v223 = vlaneseq
    %v224 = vshrl.u32 %v223, 7
    %v225 = vsub.s32 1, %v224
    %v226 = vrot.slane %v79, %v225
    %v245 = vunpack.c.l.b16 %v41
    %v246 = vunpack.c.h.b16 %v41
    %v247 = vunpack.c.l.b16 %v42
    %v248 = vunpack.c.h.b16 %v42
    %v249 = vunpack.c.l.b16 %v43
    %v250 = vunpack.c.h.b16 %v43
    %v251 = vunpack.c.l.b16 %v44
    %v252 = vunpack.c.h.b16 %v44
    %v253 = vunpack.c.l.b16 %v45
    %v254 = vunpack.c.h.b16 %v45
    %v255 = vunpack.c.l.b16 %v46
    %v256 = vunpack.c.h.b16 %v46
    %v257 = vunpack.c.l.b16 %v47
    %v258 = vunpack.c.h.b16 %v47
    %v259 = vunpack.c.l.b16 %v48
    %v260 = vunpack.c.h.b16 %v48
    %v261 = vunpack.c.l.b16 %v49
    %v262 = vunpack.c.h.b16 %v49
    %v263 = vunpack.c.l.b16 %v50
    %v264 = vunpack.c.h.b16 %v50
    %v265 = vunpack.c.l.b16 %v51
    %v266 = vunpack.c.h.b16 %v51
    %v267 = vunpack.c.l.b16 %v52
    %v268 = vunpack.c.h.b16 %v52
    %v269 = vunpack.c.l.b16 %v53
    %v270 = vunpack.c.h.b16 %v53
    %v271 = vunpack.c.l.b16 %v54
    %v272 = vunpack.c.h.b16 %v54
    %v273 = vunpack.c.l.b16 %v55
    %v274 = vunpack.c.h.b16 %v55
    %v275 = vunpack.c.l.b16 %v56
    %v276 = vunpack.c.h.b16 %v56
    %v277 = vpack.c.b16 %v247, %v245
    %v278 = vpack.c.b16 %v248, %v246
    %v279 = vpack.c.b16 %v251, %v249
    %v280 = vpack.c.b16 %v252, %v250
    %v281 = vpack.c.b16 %v255, %v253
    %v282 = vpack.c.b16 %v256, %v254
    %v283 = vpack.c.b16 %v259, %v257
    %v284 = vpack.c.b16 %v260, %v258
    %v285 = vpack.c.b16 %v263, %v261
    %v286 = vpack.c.b16 %v264, %v262
    %v287 = vpack.c.b16 %v267, %v265
    %v288 = vpack.c.b16 %v268, %v266
    %v289 = vpack.c.b16 %v271, %v269
    %v290 = vpack.c.b16 %v272, %v270
    %v291 = vpack.c.b16 %v275, %v273
    %v292 = vpack.c.b16 %v276, %v274
    %309 = vmatprep.subr.bf16.mxu0 %v292
    %310 = vmatpush1.bf16.msra.mxu0 %v291
    %311 = vmatprep.subr.bf16.mxu0 %v290
    %312 = vmatpush1.bf16.msra.mxu0 %v289
    %313 = vmatprep.subr.bf16.mxu0 %v288
    %314 = vmatpush1.bf16.msra.mxu0 %v287
    %315 = vmatprep.subr.bf16.mxu0 %v286
    %316 = vmatpush1.bf16.msra.mxu0 %v285
    %317 = vmatprep.subr.bf16.mxu0 %v284
    %318 = vmatpush1.bf16.msra.mxu0 %v283
    %319 = vmatprep.subr.bf16.mxu0 %v282
    %320 = vmatpush1.bf16.msra.mxu0 %v281
    %321 = vmatprep.subr.bf16.mxu0 %v280
    %322 = vmatpush1.bf16.msra.mxu0 %v279
    %323 = vmatprep.subr.bf16.mxu0 %v278
    %324 = vmatpush1.bf16.msra.mxu0 %v277
    %325 = vmatprep.subr.bf16.mxu0 0
    %326 = vmatpush2.bf16.msra.mxu0 0
    %327 = vmatprep.subr.bf16.mxu0 0
    %328 = vmatpush2.bf16.msra.mxu0 0
    %329 = vmatprep.subr.bf16.mxu0 0
    %330 = vmatpush2.bf16.msra.mxu0 0
    %331 = vmatprep.subr.bf16.mxu0 0
    %332 = vmatpush2.bf16.msra.mxu0 0
    %333 = vmatprep.subr.bf16.mxu0 0
    %334 = vmatpush2.bf16.msra.mxu0 0
    %335 = vmatprep.subr.bf16.mxu0 0
    %336 = vmatpush2.bf16.msra.mxu0 0
    %337 = vmatprep.subr.bf16.mxu0 0
    %338 = vmatpush2.bf16.msra.mxu0 0
    %339 = vmatprep.subr.bf16.mxu0 0
    %340 = vmatpush2.bf16.msra.mxu0 0
    %341 = vmatprep.mubr.bf16.mxu0 0
    %342 = vmatmul.mubr.bf16.gmra.mxu0 %v217
    %v343 = vpop.f32.mrf.mxu0
    %v344 = vadd.f32 %v222, %v343
    %v345 = vpop.f32.mrf.mxu0
    %v346 = vadd.f32 %v226, %v345
    %v347 = vpop.f32.mrf.mxu0
    %v348 = vpop.f32.mrf.mxu0
    %349 = vdwg.mxu0
    %v358 = vunpack.c.l.b16 %v57
    %v359 = vunpack.c.h.b16 %v57
    %v360 = vunpack.c.l.b16 %v58
    %v361 = vunpack.c.h.b16 %v58
    %v362 = vunpack.c.l.b16 %v59
    %v363 = vunpack.c.h.b16 %v59
    %v364 = vunpack.c.l.b16 %v60
    %v365 = vunpack.c.h.b16 %v60
    %v366 = vunpack.c.l.b16 %v61
    %v367 = vunpack.c.h.b16 %v61
    %v368 = vunpack.c.l.b16 %v62
    %v369 = vunpack.c.h.b16 %v62
    %v370 = vunpack.c.l.b16 %v63
    %v371 = vunpack.c.h.b16 %v63
    %v372 = vunpack.c.l.b16 %v64
    %v373 = vunpack.c.h.b16 %v64
    %v374 = vpack.c.b16 %v360, %v358
    %v375 = vpack.c.b16 %v361, %v359
    %v376 = vpack.c.b16 %v364, %v362
    %v377 = vpack.c.b16 %v365, %v363
    %v378 = vpack.c.b16 %v368, %v366
    %v379 = vpack.c.b16 %v369, %v367
    %v380 = vpack.c.b16 %v372, %v370
    %v381 = vpack.c.b16 %v373, %v371
    %v391 = vsel %vm172, 0, 0
    %393 = vmatprep.subr.bf16.mxu0 0
    %394 = vmatpush1.bf16.msra.mxu0 0
    %395 = vmatprep.subr.bf16.mxu0 0
    %396 = vmatpush1.bf16.msra.mxu0 0
    %397 = vmatprep.subr.bf16.mxu0 0
    %398 = vmatpush1.bf16.msra.mxu0 0
    %399 = vmatprep.subr.bf16.mxu0 0
    %400 = vmatpush1.bf16.msra.mxu0 0
    %401 = vmatprep.subr.bf16.mxu0 %v381
    %402 = vmatpush1.bf16.msra.mxu0 %v380
    %403 = vmatprep.subr.bf16.mxu0 %v379
    %404 = vmatpush1.bf16.msra.mxu0 %v378
    %405 = vmatprep.subr.bf16.mxu0 %v377
    %406 = vmatpush1.bf16.msra.mxu0 %v376
    %407 = vmatprep.subr.bf16.mxu0 %v375
    %408 = vmatpush1.bf16.msra.mxu0 %v374
    %409 = vmatprep.subr.bf16.mxu0 0
    %410 = vmatpush2.bf16.msra.mxu0 0
    %411 = vmatprep.subr.bf16.mxu0 0
    %412 = vmatpush2.bf16.msra.mxu0 0
    %413 = vmatprep.subr.bf16.mxu0 0
    %414 = vmatpush2.bf16.msra.mxu0 0
    %415 = vmatprep.subr.bf16.mxu0 0
    %416 = vmatpush2.bf16.msra.mxu0 0
    %417 = vmatprep.subr.bf16.mxu0 0
    %418 = vmatpush2.bf16.msra.mxu0 0
    %419 = vmatprep.subr.bf16.mxu0 0
    %420 = vmatpush2.bf16.msra.mxu0 0
    %421 = vmatprep.subr.bf16.mxu0 0
    %422 = vmatpush2.bf16.msra.mxu0 0
    %423 = vmatprep.subr.bf16.mxu0 0
    %424 = vmatpush2.bf16.msra.mxu0 0
    %425 = vmatprep.mubr.bf16.mxu0 0
    %426 = vmatmul.mubr.bf16.gmra.mxu0 %v391
    %v427 = vpop.f32.mrf.mxu0
    %v428 = vadd.f32 0.0, %v427
    %v429 = vpop.f32.mrf.mxu0
    %v430 = vadd.f32 0.0, %v429
    %v431 = vpop.f32.mrf.mxu0
    %v432 = vpop.f32.mrf.mxu0
    %433 = vdwg.mxu0
    %v434 = vadd.f32 %v344, %v428
    %v435 = vadd.f32 %v346, %v430
    %v436 = vmul.f32 %v434, 0.5
    %v437 = vmul.f32 %v435, 0.5
    %v438 = vtanh.pop %v436
    %v439 = vtanh.pop %v437
    %v440 = vadd.f32 %v438, 1.0
    %v441 = vadd.f32 %v439, 1.0
    %v442 = vmul.f32 %v440, 0.5
    %v443 = vmul.f32 %v441, 0.5
    %v444 = vtanh.pop %v435
    %v445 = vmul.f32 %v442, 0.0
    %447 = vrot.lane.b32.xlu0 %v444, 64
    %v448 = vpop.permute.xlu0 %447
    %v450 = vmul.f32 %v442, %v448
    %452 = vrot.lane.b32.xlu0 %v450, 64
    %v453 = vpop.permute.xlu0 %452
    %v455 = vadd.f32 %v445, %v453
    %v456 = vtanh.pop %v455
    %458 = vrot.lane.b32.xlu0 %v456, 64
    %v459 = vpop.permute.xlu0 %458
    %v461 = vmul.f32 %v443, %v459
    %v462 = vpack.c.bf16 %v461, %v461
    %v464 = vsel %vm172, %v462, 0
    %466 = vmatprep.subr.bf16.mxu0 0
    %467 = vmatpush1.bf16.msra.mxu0 0
    %468 = vmatprep.subr.bf16.mxu0 0
    %469 = vmatpush1.bf16.msra.mxu0 0
    %470 = vmatprep.subr.bf16.mxu0 0
    %471 = vmatpush1.bf16.msra.mxu0 0
    %472 = vmatprep.subr.bf16.mxu0 0
    %473 = vmatpush1.bf16.msra.mxu0 0
    %474 = vmatprep.subr.bf16.mxu0 %v381
    %475 = vmatpush1.bf16.msra.mxu0 %v380
    %476 = vmatprep.subr.bf16.mxu0 %v379
    %477 = vmatpush1.bf16.msra.mxu0 %v378
    %478 = vmatprep.subr.bf16.mxu0 %v377
    %479 = vmatpush1.bf16.msra.mxu0 %v376
    %480 = vmatprep.subr.bf16.mxu0 %v375
    %481 = vmatpush1.bf16.msra.mxu0 %v374
    %482 = vmatprep.subr.bf16.mxu0 0
    %483 = vmatpush2.bf16.msra.mxu0 0
    %484 = vmatprep.subr.bf16.mxu0 0
    %485 = vmatpush2.bf16.msra.mxu0 0
    %486 = vmatprep.subr.bf16.mxu0 0
    %487 = vmatpush2.bf16.msra.mxu0 0
    %488 = vmatprep.subr.bf16.mxu0 0
    %489 = vmatpush2.bf16.msra.mxu0 0
    %490 = vmatprep.subr.bf16.mxu0 0
    %491 = vmatpush2.bf16.msra.mxu0 0
    %492 = vmatprep.subr.bf16.mxu0 0
    %493 = vmatpush2.bf16.msra.mxu0 0
    %494 = vmatprep.subr.bf16.mxu0 0
    %495 = vmatpush2.bf16.msra.mxu0 0
    %496 = vmatprep.subr.bf16.mxu0 0
    %497 = vmatpush2.bf16.msra.mxu0 0
    %498 = vmatprep.mubr.bf16.mxu0 0
    %499 = vmatmul.mubr.bf16.gmra.mxu0 %v464
    %v500 = vpop.f32.mrf.mxu0
    %v501 = vadd.f32 0.0, %v500
    %v502 = vpop.f32.mrf.mxu0
    %v503 = vadd.f32 0.0, %v502
    %v504 = vpop.f32.mrf.mxu0
    %v505 = vpop.f32.mrf.mxu0
    %506 = vdwg.mxu0
    %v509 = vrot.slane %v501, 7
    %v510 = vrot.slane %v503, 7
    %v513 = vadd.f32 %v344, %v509
    %v514 = vadd.f32 %v346, %v510
    %v515 = vmul.f32 %v513, 0.5
    %v516 = vmul.f32 %v514, 0.5
    %v517 = vtanh.pop %v515
    %v518 = vtanh.pop %v516
    %v519 = vadd.f32 %v517, 1.0
    %v520 = vadd.f32 %v518, 1.0
    %v521 = vmul.f32 %v519, 0.5
    %v522 = vmul.f32 %v520, 0.5
    %v523 = vtanh.pop %v514
    %v525 = vrot.slane %v455, 7
    %v527 = vmul.f32 %v521, %v525
    %529 = vrot.lane.b32.xlu0 %v523, 64
    %v530 = vpop.permute.xlu0 %529
    %v532 = vmul.f32 %v521, %v530
    %534 = vrot.lane.b32.xlu0 %v532, 64
    %v535 = vpop.permute.xlu0 %534
    %v537 = vadd.f32 %v527, %v535
    %v538 = vtanh.pop %v537
    %540 = vrot.lane.b32.xlu0 %v538, 64
    %v541 = vpop.permute.xlu0 %540
    %v543 = vmul.f32 %v522, %v541
    %v544 = vpack.c.bf16 %v543, %v543
    %v546 = vshrl.u32 %v544, 16
    %v549 = vsel %vm172, %v546, 0
    %551 = vmatprep.subr.bf16.mxu0 0
    %552 = vmatpush1.bf16.msra.mxu0 0
    %553 = vmatprep.subr.bf16.mxu0 0
    %554 = vmatpush1.bf16.msra.mxu0 0
    %555 = vmatprep.subr.bf16.mxu0 0
    %556 = vmatpush1.bf16.msra.mxu0 0
    %557 = vmatprep.subr.bf16.mxu0 0
    %558 = vmatpush1.bf16.msra.mxu0 0
    %559 = vmatprep.subr.bf16.mxu0 %v381
    %560 = vmatpush1.bf16.msra.mxu0 %v380
    %561 = vmatprep.subr.bf16.mxu0 %v379
    %562 = vmatpush1.bf16.msra.mxu0 %v378
    %563 = vmatprep.subr.bf16.mxu0 %v377
    %564 = vmatpush1.bf16.msra.mxu0 %v376
    %565 = vmatprep.subr.bf16.mxu0 %v375
    %566 = vmatpush1.bf16.msra.mxu0 %v374
    %567 = vmatprep.subr.bf16.mxu0 0
    %568 = vmatpush2.bf16.msra.mxu0 0
    %569 = vmatprep.subr.bf16.mxu0 0
    %570 = vmatpush2.bf16.msra.mxu0 0
    %571 = vmatprep.subr.bf16.mxu0 0
    %572 = vmatpush2.bf16.msra.mxu0 0
    %573 = vmatprep.subr.bf16.mxu0 0
    %574 = vmatpush2.bf16.msra.mxu0 0
    %575 = vmatprep.subr.bf16.mxu0 0
    %576 = vmatpush2.bf16.msra.mxu0 0
    %577 = vmatprep.subr.bf16.mxu0 0
    %578 = vmatpush2.bf16.msra.mxu0 0
    %579 = vmatprep.subr.bf16.mxu0 0
    %580 = vmatpush2.bf16.msra.mxu0 0
    %581 = vmatprep.subr.bf16.mxu0 0
    %582 = vmatpush2.bf16.msra.mxu0 0
    %583 = vmatprep.mubr.bf16.mxu0 0
    %584 = vmatmul.mubr.bf16.gmra.mxu0 %v549
    %v585 = vpop.f32.mrf.mxu0
    %v586 = vadd.f32 0.0, %v585
    %v587 = vpop.f32.mrf.mxu0
    %v588 = vadd.f32 0.0, %v587
    %v589 = vpop.f32.mrf.mxu0
    %v590 = vpop.f32.mrf.mxu0
    %591 = vdwg.mxu0
    %v594 = vrot.slane %v586, 6
    %v595 = vrot.slane %v588, 6
    %v598 = vadd.f32 %v344, %v594
    %v599 = vadd.f32 %v346, %v595
    %v600 = vmul.f32 %v598, 0.5
    %v601 = vmul.f32 %v599, 0.5
    %v602 = vtanh.pop %v600
    %v603 = vtanh.pop %v601
    %v604 = vadd.f32 %v602, 1.0
    %v605 = vadd.f32 %v603, 1.0
    %v606 = vmul.f32 %v604, 0.5
    %v607 = vmul.f32 %v605, 0.5
    %v608 = vtanh.pop %v599
    %v610 = vrot.slane %v537, 7
    %v612 = vmul.f32 %v606, %v610
    %614 = vrot.lane.b32.xlu0 %v608, 64
    %v615 = vpop.permute.xlu0 %614
    %v617 = vmul.f32 %v606, %v615
    %619 = vrot.lane.b32.xlu0 %v617, 64
    %v620 = vpop.permute.xlu0 %619
    %v622 = vadd.f32 %v612, %v620
    %v623 = vtanh.pop %v622
    %625 = vrot.lane.b32.xlu0 %v623, 64
    %v626 = vpop.permute.xlu0 %625
    %v628 = vmul.f32 %v607, %v626
    %v629 = vpack.c.bf16 %v628, %v628
    %v631 = vrot.slane %v629, 1
    %v633 = vsel %vm172, %v631, 0
    %635 = vmatprep.subr.bf16.mxu0 0
    %636 = vmatpush1.bf16.msra.mxu0 0
    %637 = vmatprep.subr.bf16.mxu0 0
    %638 = vmatpush1.bf16.msra.mxu0 0
    %639 = vmatprep.subr.bf16.mxu0 0
    %640 = vmatpush1.bf16.msra.mxu0 0
    %641 = vmatprep.subr.bf16.mxu0 0
    %642 = vmatpush1.bf16.msra.mxu0 0
    %643 = vmatprep.subr.bf16.mxu0 %v381
    %644 = vmatpush1.bf16.msra.mxu0 %v380
    %645 = vmatprep.subr.bf16.mxu0 %v379
    %646 = vmatpush1.bf16.msra.mxu0 %v378
    %647 = vmatprep.subr.bf16.mxu0 %v377
    %648 = vmatpush1.bf16.msra.mxu0 %v376
    %649 = vmatprep.subr.bf16.mxu0 %v375
    %650 = vmatpush1.bf16.msra.mxu0 %v374
    %651 = vmatprep.subr.bf16.mxu0 0
    %652 = vmatpush2.bf16.msra.mxu0 0
    %653 = vmatprep.subr.bf16.mxu0 0
    %654 = vmatpush2.bf16.msra.mxu0 0
    %655 = vmatprep.subr.bf16.mxu0 0
    %656 = vmatpush2.bf16.msra.mxu0 0
    %657 = vmatprep.subr.bf16.mxu0 0
    %658 = vmatpush2.bf16.msra.mxu0 0
    %659 = vmatprep.subr.bf16.mxu0 0
    %660 = vmatpush2.bf16.msra.mxu0 0
    %661 = vmatprep.subr.bf16.mxu0 0
    %662 = vmatpush2.bf16.msra.mxu0 0
    %663 = vmatprep.subr.bf16.mxu0 0
    %664 = vmatpush2.bf16.msra.mxu0 0
    %665 = vmatprep.subr.bf16.mxu0 0
    %666 = vmatpush2.bf16.msra.mxu0 0
    %667 = vmatprep.mubr.bf16.mxu0 0
    %668 = vmatmul.mubr.bf16.gmra.mxu0 %v633
    %v669 = vpop.f32.mrf.mxu0
    %v670 = vadd.f32 0.0, %v669
    %v671 = vpop.f32.mrf.mxu0
    %v672 = vadd.f32 0.0, %v671
    %v673 = vpop.f32.mrf.mxu0
    %v674 = vpop.f32.mrf.mxu0
    %675 = vdwg.mxu0
    %v678 = vrot.slane %v670, 5
    %v679 = vrot.slane %v672, 5
    %v682 = vadd.f32 %v344, %v678
    %v683 = vadd.f32 %v346, %v679
    %v684 = vmul.f32 %v682, 0.5
    %v685 = vmul.f32 %v683, 0.5
    %v686 = vtanh.pop %v684
    %v687 = vtanh.pop %v685
    %v688 = vadd.f32 %v686, 1.0
    %v689 = vadd.f32 %v687, 1.0
    %v690 = vmul.f32 %v688, 0.5
    %v691 = vmul.f32 %v689, 0.5
    %v692 = vtanh.pop %v683
    %v694 = vrot.slane %v622, 7
    %v696 = vmul.f32 %v690, %v694
    %698 = vrot.lane.b32.xlu0 %v692, 64
    %v699 = vpop.permute.xlu0 %698
    %v701 = vmul.f32 %v690, %v699
    %703 = vrot.lane.b32.xlu0 %v701, 64
    %v704 = vpop.permute.xlu0 %703
    %v706 = vadd.f32 %v696, %v704
    %v707 = vtanh.pop %v706
    %709 = vrot.lane.b32.xlu0 %v707, 64
    %v710 = vpop.permute.xlu0 %709
    %v712 = vmul.f32 %v691, %v710
    %v713 = vpack.c.bf16 %v712, %v712
    %v715 = vshrl.u32 %v713, 16
    %v717 = vrot.slane %v715, 1
    %v719 = vsel %vm172, %v717, 0
    %721 = vmatprep.subr.bf16.mxu0 0
    %722 = vmatpush1.bf16.msra.mxu0 0
    %723 = vmatprep.subr.bf16.mxu0 0
    %724 = vmatpush1.bf16.msra.mxu0 0
    %725 = vmatprep.subr.bf16.mxu0 0
    %726 = vmatpush1.bf16.msra.mxu0 0
    %727 = vmatprep.subr.bf16.mxu0 0
    %728 = vmatpush1.bf16.msra.mxu0 0
    %729 = vmatprep.subr.bf16.mxu0 %v381
    %730 = vmatpush1.bf16.msra.mxu0 %v380
    %731 = vmatprep.subr.bf16.mxu0 %v379
    %732 = vmatpush1.bf16.msra.mxu0 %v378
    %733 = vmatprep.subr.bf16.mxu0 %v377
    %734 = vmatpush1.bf16.msra.mxu0 %v376
    %735 = vmatprep.subr.bf16.mxu0 %v375
    %736 = vmatpush1.bf16.msra.mxu0 %v374
    %737 = vmatprep.subr.bf16.mxu0 0
    %738 = vmatpush2.bf16.msra.mxu0 0
    %739 = vmatprep.subr.bf16.mxu0 0
    %740 = vmatpush2.bf16.msra.mxu0 0
    %741 = vmatprep.subr.bf16.mxu0 0
    %742 = vmatpush2.bf16.msra.mxu0 0
    %743 = vmatprep.subr.bf16.mxu0 0
    %744 = vmatpush2.bf16.msra.mxu0 0
    %745 = vmatprep.subr.bf16.mxu0 0
    %746 = vmatpush2.bf16.msra.mxu0 0
    %747 = vmatprep.subr.bf16.mxu0 0
    %748 = vmatpush2.bf16.msra.mxu0 0
    %749 = vmatprep.subr.bf16.mxu0 0
    %750 = vmatpush2.bf16.msra.mxu0 0
    %751 = vmatprep.subr.bf16.mxu0 0
    %752 = vmatpush2.bf16.msra.mxu0 0
    %753 = vmatprep.mubr.bf16.mxu0 0
    %754 = vmatmul.mubr.bf16.gmra.mxu0 %v719
    %v755 = vpop.f32.mrf.mxu0
    %v756 = vadd.f32 0.0, %v755
    %v757 = vpop.f32.mrf.mxu0
    %v758 = vadd.f32 0.0, %v757
    %v759 = vpop.f32.mrf.mxu0
    %v760 = vpop.f32.mrf.mxu0
    %761 = vdwg.mxu0
    %v764 = vrot.slane %v756, 4
    %v765 = vrot.slane %v758, 4
    %v768 = vadd.f32 %v344, %v764
    %v769 = vadd.f32 %v346, %v765
    %v770 = vmul.f32 %v768, 0.5
    %v771 = vmul.f32 %v769, 0.5
    %v772 = vtanh.pop %v770
    %v773 = vtanh.pop %v771
    %v774 = vadd.f32 %v772, 1.0
    %v775 = vadd.f32 %v773, 1.0
    %v776 = vmul.f32 %v774, 0.5
    %v777 = vmul.f32 %v775, 0.5
    %v778 = vtanh.pop %v769
    %v780 = vrot.slane %v706, 7
    %v782 = vmul.f32 %v776, %v780
    %784 = vrot.lane.b32.xlu0 %v778, 64
    %v785 = vpop.permute.xlu0 %784
    %v787 = vmul.f32 %v776, %v785
    %789 = vrot.lane.b32.xlu0 %v787, 64
    %v790 = vpop.permute.xlu0 %789
    %v792 = vadd.f32 %v782, %v790
    %v793 = vtanh.pop %v792
    %795 = vrot.lane.b32.xlu0 %v793, 64
    %v796 = vpop.permute.xlu0 %795
    %v798 = vmul.f32 %v777, %v796
    %v799 = vpack.c.bf16 %v798, %v798
    %v801 = vrot.slane %v799, 2
    %v803 = vsel %vm172, %v801, 0
    %805 = vmatprep.subr.bf16.mxu0 0
    %806 = vmatpush1.bf16.msra.mxu0 0
    %807 = vmatprep.subr.bf16.mxu0 0
    %808 = vmatpush1.bf16.msra.mxu0 0
    %809 = vmatprep.subr.bf16.mxu0 0
    %810 = vmatpush1.bf16.msra.mxu0 0
    %811 = vmatprep.subr.bf16.mxu0 0
    %812 = vmatpush1.bf16.msra.mxu0 0
    %813 = vmatprep.subr.bf16.mxu0 %v381
    %814 = vmatpush1.bf16.msra.mxu0 %v380
    %815 = vmatprep.subr.bf16.mxu0 %v379
    %816 = vmatpush1.bf16.msra.mxu0 %v378
    %817 = vmatprep.subr.bf16.mxu0 %v377
    %818 = vmatpush1.bf16.msra.mxu0 %v376
    %819 = vmatprep.subr.bf16.mxu0 %v375
    %820 = vmatpush1.bf16.msra.mxu0 %v374
    %821 = vmatprep.subr.bf16.mxu0 0
    %822 = vmatpush2.bf16.msra.mxu0 0
    %823 = vmatprep.subr.bf16.mxu0 0
    %824 = vmatpush2.bf16.msra.mxu0 0
    %825 = vmatprep.subr.bf16.mxu0 0
    %826 = vmatpush2.bf16.msra.mxu0 0
    %827 = vmatprep.subr.bf16.mxu0 0
    %828 = vmatpush2.bf16.msra.mxu0 0
    %829 = vmatprep.subr.bf16.mxu0 0
    %830 = vmatpush2.bf16.msra.mxu0 0
    %831 = vmatprep.subr.bf16.mxu0 0
    %832 = vmatpush2.bf16.msra.mxu0 0
    %833 = vmatprep.subr.bf16.mxu0 0
    %834 = vmatpush2.bf16.msra.mxu0 0
    %835 = vmatprep.subr.bf16.mxu0 0
    %836 = vmatpush2.bf16.msra.mxu0 0
    %837 = vmatprep.mubr.bf16.mxu0 0
    %838 = vmatmul.mubr.bf16.gmra.mxu0 %v803
    %v839 = vpop.f32.mrf.mxu0
    %v840 = vadd.f32 0.0, %v839
    %v841 = vpop.f32.mrf.mxu0
    %v842 = vadd.f32 0.0, %v841
    %v843 = vpop.f32.mrf.mxu0
    %v844 = vpop.f32.mrf.mxu0
    %845 = vdwg.mxu0
    %v848 = vrot.slane %v840, 3
    %v849 = vrot.slane %v842, 3
    %v852 = vadd.f32 %v344, %v848
    %v853 = vadd.f32 %v346, %v849
    %v854 = vmul.f32 %v852, 0.5
    %v855 = vmul.f32 %v853, 0.5
    %v856 = vtanh.pop %v854
    %v857 = vtanh.pop %v855
    %v858 = vadd.f32 %v856, 1.0
    %v859 = vadd.f32 %v857, 1.0
    %v860 = vmul.f32 %v858, 0.5
    %v861 = vmul.f32 %v859, 0.5
    %v862 = vtanh.pop %v853
    %v864 = vrot.slane %v792, 7
    %v866 = vmul.f32 %v860, %v864
    %868 = vrot.lane.b32.xlu0 %v862, 64
    %v869 = vpop.permute.xlu0 %868
    %v871 = vmul.f32 %v860, %v869
    %873 = vrot.lane.b32.xlu0 %v871, 64
    %v874 = vpop.permute.xlu0 %873
    %v876 = vadd.f32 %v866, %v874
    %v877 = vtanh.pop %v876
    %879 = vrot.lane.b32.xlu0 %v877, 64
    %v880 = vpop.permute.xlu0 %879
    %v882 = vmul.f32 %v861, %v880
    %v883 = vpack.c.bf16 %v882, %v882
    %v885 = vshrl.u32 %v883, 16
    %v887 = vrot.slane %v885, 2
    %v889 = vsel %vm172, %v887, 0
    %891 = vmatprep.subr.bf16.mxu0 0
    %892 = vmatpush1.bf16.msra.mxu0 0
    %893 = vmatprep.subr.bf16.mxu0 0
    %894 = vmatpush1.bf16.msra.mxu0 0
    %895 = vmatprep.subr.bf16.mxu0 0
    %896 = vmatpush1.bf16.msra.mxu0 0
    %897 = vmatprep.subr.bf16.mxu0 0
    %898 = vmatpush1.bf16.msra.mxu0 0
    %899 = vmatprep.subr.bf16.mxu0 %v381
    %900 = vmatpush1.bf16.msra.mxu0 %v380
    %901 = vmatprep.subr.bf16.mxu0 %v379
    %902 = vmatpush1.bf16.msra.mxu0 %v378
    %903 = vmatprep.subr.bf16.mxu0 %v377
    %904 = vmatpush1.bf16.msra.mxu0 %v376
    %905 = vmatprep.subr.bf16.mxu0 %v375
    %906 = vmatpush1.bf16.msra.mxu0 %v374
    %907 = vmatprep.subr.bf16.mxu0 0
    %908 = vmatpush2.bf16.msra.mxu0 0
    %909 = vmatprep.subr.bf16.mxu0 0
    %910 = vmatpush2.bf16.msra.mxu0 0
    %911 = vmatprep.subr.bf16.mxu0 0
    %912 = vmatpush2.bf16.msra.mxu0 0
    %913 = vmatprep.subr.bf16.mxu0 0
    %914 = vmatpush2.bf16.msra.mxu0 0
    %915 = vmatprep.subr.bf16.mxu0 0
    %916 = vmatpush2.bf16.msra.mxu0 0
    %917 = vmatprep.subr.bf16.mxu0 0
    %918 = vmatpush2.bf16.msra.mxu0 0
    %919 = vmatprep.subr.bf16.mxu0 0
    %920 = vmatpush2.bf16.msra.mxu0 0
    %921 = vmatprep.subr.bf16.mxu0 0
    %922 = vmatpush2.bf16.msra.mxu0 0
    %923 = vmatprep.mubr.bf16.mxu0 0
    %924 = vmatmul.mubr.bf16.gmra.mxu0 %v889
    %v925 = vpop.f32.mrf.mxu0
    %v926 = vadd.f32 0.0, %v925
    %v927 = vpop.f32.mrf.mxu0
    %v928 = vadd.f32 0.0, %v927
    %v929 = vpop.f32.mrf.mxu0
    %v930 = vpop.f32.mrf.mxu0
    %931 = vdwg.mxu0
    %v934 = vrot.slane %v926, 2
    %v935 = vrot.slane %v928, 2
    %v938 = vadd.f32 %v344, %v934
    %v939 = vadd.f32 %v346, %v935
    %v940 = vmul.f32 %v938, 0.5
    %v941 = vmul.f32 %v939, 0.5
    %v942 = vtanh.pop %v940
    %v943 = vtanh.pop %v941
    %v944 = vadd.f32 %v942, 1.0
    %v945 = vadd.f32 %v943, 1.0
    %v946 = vmul.f32 %v944, 0.5
    %v947 = vmul.f32 %v945, 0.5
    %v948 = vtanh.pop %v939
    %v950 = vrot.slane %v876, 7
    %v952 = vmul.f32 %v946, %v950
    %954 = vrot.lane.b32.xlu0 %v948, 64
    %v955 = vpop.permute.xlu0 %954
    %v957 = vmul.f32 %v946, %v955
    %959 = vrot.lane.b32.xlu0 %v957, 64
    %v960 = vpop.permute.xlu0 %959
    %v962 = vadd.f32 %v952, %v960
    %v963 = vtanh.pop %v962
    %965 = vrot.lane.b32.xlu0 %v963, 64
    %v966 = vpop.permute.xlu0 %965
    %v968 = vmul.f32 %v947, %v966
    %v969 = vpack.c.bf16 %v968, %v968
    %v971 = vrot.slane %v969, 3
    %v973 = vsel %vm172, %v971, 0
    %975 = vmatprep.subr.bf16.mxu0 0
    %976 = vmatpush1.bf16.msra.mxu0 0
    %977 = vmatprep.subr.bf16.mxu0 0
    %978 = vmatpush1.bf16.msra.mxu0 0
    %979 = vmatprep.subr.bf16.mxu0 0
    %980 = vmatpush1.bf16.msra.mxu0 0
    %981 = vmatprep.subr.bf16.mxu0 0
    %982 = vmatpush1.bf16.msra.mxu0 0
    %983 = vmatprep.subr.bf16.mxu0 %v381
    %984 = vmatpush1.bf16.msra.mxu0 %v380
    %985 = vmatprep.subr.bf16.mxu0 %v379
    %986 = vmatpush1.bf16.msra.mxu0 %v378
    %987 = vmatprep.subr.bf16.mxu0 %v377
    %988 = vmatpush1.bf16.msra.mxu0 %v376
    %989 = vmatprep.subr.bf16.mxu0 %v375
    %990 = vmatpush1.bf16.msra.mxu0 %v374
    %991 = vmatprep.subr.bf16.mxu0 0
    %992 = vmatpush2.bf16.msra.mxu0 0
    %993 = vmatprep.subr.bf16.mxu0 0
    %994 = vmatpush2.bf16.msra.mxu0 0
    %995 = vmatprep.subr.bf16.mxu0 0
    %996 = vmatpush2.bf16.msra.mxu0 0
    %997 = vmatprep.subr.bf16.mxu0 0
    %998 = vmatpush2.bf16.msra.mxu0 0
    %999 = vmatprep.subr.bf16.mxu0 0
    %1000 = vmatpush2.bf16.msra.mxu0 0
    %1001 = vmatprep.subr.bf16.mxu0 0
    %1002 = vmatpush2.bf16.msra.mxu0 0
    %1003 = vmatprep.subr.bf16.mxu0 0
    %1004 = vmatpush2.bf16.msra.mxu0 0
    %1005 = vmatprep.subr.bf16.mxu0 0
    %1006 = vmatpush2.bf16.msra.mxu0 0
    %1007 = vmatprep.mubr.bf16.mxu0 0
    %1008 = vmatmul.mubr.bf16.gmra.mxu0 %v973
    %v1009 = vpop.f32.mrf.mxu0
    %v1010 = vadd.f32 0.0, %v1009
    %v1011 = vpop.f32.mrf.mxu0
    %v1012 = vadd.f32 0.0, %v1011
    %v1013 = vpop.f32.mrf.mxu0
    %v1014 = vpop.f32.mrf.mxu0
    %1015 = vdwg.mxu0
    %v1018 = vrot.slane %v1010, 1
    %v1019 = vrot.slane %v1012, 1
    %v1022 = vadd.f32 %v344, %v1018
    %v1023 = vadd.f32 %v346, %v1019
    %v1024 = vmul.f32 %v1022, 0.5
    %v1025 = vmul.f32 %v1023, 0.5
    %v1026 = vtanh.pop %v1024
    %v1027 = vtanh.pop %v1025
    %v1028 = vadd.f32 %v1026, 1.0
    %v1029 = vadd.f32 %v1027, 1.0
    %v1030 = vmul.f32 %v1028, 0.5
    %v1031 = vmul.f32 %v1029, 0.5
    %v1032 = vtanh.pop %v1023
    %v1034 = vrot.slane %v962, 7
    %v1036 = vmul.f32 %v1030, %v1034
    %1038 = vrot.lane.b32.xlu0 %v1032, 64
    %v1039 = vpop.permute.xlu0 %1038
    %v1041 = vmul.f32 %v1030, %v1039
    %1043 = vrot.lane.b32.xlu0 %v1041, 64
    %v1044 = vpop.permute.xlu0 %1043
    %v1046 = vadd.f32 %v1036, %v1044
    %v1047 = vtanh.pop %v1046
    %1049 = vrot.lane.b32.xlu0 %v1047, 64
    %v1050 = vpop.permute.xlu0 %1049
    %v1052 = vmul.f32 %v1031, %v1050
    %vm1053 = vcmask 1040384
    %v1054 = vsel %vm1053, %v461, %v543
    %vm1055 = vcmask 1041408
    %v1056 = vsel %vm1055, %v1054, %v628
    %vm1057 = vcmask 1042432
    %v1058 = vsel %vm1057, %v1056, %v712
    %v1059 = vsel %vm96, %v1058, %v798
    %vm1060 = vcmask 1044480
    %v1061 = vsel %vm1060, %v1059, %v882
    %vm1062 = vcmask 1045504
    %v1063 = vsel %vm1062, %v1061, %v968
    %vm1064 = vcmask 1046528
    %v1065 = vsel %vm1064, %v1063, %v1052
    %v1066 = vpack.c.bf16 %v1065, %v1065
    %v1068 = vlaneseq
    %v1069 = vshrl.u32 %v1068, 7
    %v1070 = vsub.s32 0, %v1069
    %v1071 = vrot.slane %v80, %v1070
    %v1081 = vunpack.c.l.b16 %v65
    %v1082 = vunpack.c.l.b16 %v66
    %v1083 = vunpack.c.l.b16 %v67
    %v1084 = vunpack.c.l.b16 %v68
    %v1085 = vunpack.c.l.b16 %v69
    %v1086 = vunpack.c.l.b16 %v70
    %v1087 = vunpack.c.l.b16 %v71
    %v1088 = vunpack.c.l.b16 %v72
    %v1089 = vpack.c.b16 %v1082, %v1081
    %v1090 = vpack.c.b16 %v1084, %v1083
    %v1091 = vpack.c.b16 %v1086, %v1085
    %v1092 = vpack.c.b16 %v1088, %v1087
    %v1098 = vsel %vm172, %v1066, 0
    %1100 = vmatprep.subr.bf16.mxu0 0
    %1101 = vmatpush1.bf16.msra.mxu0 0
    %1102 = vmatprep.subr.bf16.mxu0 0
    %1103 = vmatpush1.bf16.msra.mxu0 0
    %1104 = vmatprep.subr.bf16.mxu0 0
    %1105 = vmatpush1.bf16.msra.mxu0 0
    %1106 = vmatprep.subr.bf16.mxu0 0
    %1107 = vmatpush1.bf16.msra.mxu0 0
    %1108 = vmatprep.subr.bf16.mxu0 0
    %1109 = vmatpush1.bf16.msra.mxu0 %v1092
    %1110 = vmatprep.subr.bf16.mxu0 0
    %1111 = vmatpush1.bf16.msra.mxu0 %v1091
    %1112 = vmatprep.subr.bf16.mxu0 0
    %1113 = vmatpush1.bf16.msra.mxu0 %v1090
    %1114 = vmatprep.subr.bf16.mxu0 0
    %1115 = vmatpush1.bf16.msra.mxu0 %v1089
    %1116 = vmatprep.subr.bf16.mxu0 0
    %1117 = vmatpush2.bf16.msra.mxu0 0
    %1118 = vmatprep.subr.bf16.mxu0 0
    %1119 = vmatpush2.bf16.msra.mxu0 0
    %1120 = vmatprep.subr.bf16.mxu0 0
    %1121 = vmatpush2.bf16.msra.mxu0 0
    %1122 = vmatprep.subr.bf16.mxu0 0
    %1123 = vmatpush2.bf16.msra.mxu0 0
    %1124 = vmatprep.subr.bf16.mxu0 0
    %1125 = vmatpush2.bf16.msra.mxu0 0
    %1126 = vmatprep.subr.bf16.mxu0 0
    %1127 = vmatpush2.bf16.msra.mxu0 0
    %1128 = vmatprep.subr.bf16.mxu0 0
    %1129 = vmatpush2.bf16.msra.mxu0 0
    %1130 = vmatprep.subr.bf16.mxu0 0
    %1131 = vmatpush2.bf16.msra.mxu0 0
    %1132 = vmatprep.mubr.bf16.mxu0 0
    %1133 = vmatmul.mubr.bf16.gmra.mxu0 %v1098
    %v1134 = vpop.f32.mrf.mxu0
    %v1135 = vadd.f32 %v1071, %v1134
    %v1136 = vpop.f32.mrf.mxu0
    %v1137 = vpop.f32.mrf.mxu0
    %v1138 = vpop.f32.mrf.mxu0
    %1139 = vdwg.mxu0
    %v1140 = vmax.f32 %v1135, 0.0
    %v1141 = vpack.c.bf16 %v1140, %v1140
    %v1143 = vlaneseq
    %v1144 = vshrl.u32 %v1143, 7
    %v1145 = vsub.s32 0, %v1144
    %v1146 = vrot.slane %v81, %v1145
    %v1152 = vunpack.c.l.b16 %v73
    %v1153 = vunpack.c.l.b16 %v74
    %v1154 = vunpack.c.l.b16 %v75
    %v1155 = vunpack.c.l.b16 %v76
    %v1156 = vpack.c.b16 %v1153, %v1152
    %v1157 = vpack.c.b16 %v1155, %v1154
    %vm1160 = vcmask 261120
    %v1162 = vsel %vm1160, %v1141, 0
    %1164 = vmatprep.subr.bf16.mxu0 0
    %1165 = vmatpush1.bf16.msra.mxu0 0
    %1166 = vmatprep.subr.bf16.mxu0 0
    %1167 = vmatpush1.bf16.msra.mxu0 0
    %1168 = vmatprep.subr.bf16.mxu0 0
    %1169 = vmatpush1.bf16.msra.mxu0 0
    %1170 = vmatprep.subr.bf16.mxu0 0
    %1171 = vmatpush1.bf16.msra.mxu0 0
    %1172 = vmatprep.subr.bf16.mxu0 0
    %1173 = vmatpush1.bf16.msra.mxu0 0
    %1174 = vmatprep.subr.bf16.mxu0 0
    %1175 = vmatpush1.bf16.msra.mxu0 0
    %1176 = vmatprep.subr.bf16.mxu0 0
    %1177 = vmatpush1.bf16.msra.mxu0 %v1157
    %1178 = vmatprep.subr.bf16.mxu0 0
    %1179 = vmatpush1.bf16.msra.mxu0 %v1156
    %1180 = vmatprep.subr.bf16.mxu0 0
    %1181 = vmatpush2.bf16.msra.mxu0 0
    %1182 = vmatprep.subr.bf16.mxu0 0
    %1183 = vmatpush2.bf16.msra.mxu0 0
    %1184 = vmatprep.subr.bf16.mxu0 0
    %1185 = vmatpush2.bf16.msra.mxu0 0
    %1186 = vmatprep.subr.bf16.mxu0 0
    %1187 = vmatpush2.bf16.msra.mxu0 0
    %1188 = vmatprep.subr.bf16.mxu0 0
    %1189 = vmatpush2.bf16.msra.mxu0 0
    %1190 = vmatprep.subr.bf16.mxu0 0
    %1191 = vmatpush2.bf16.msra.mxu0 0
    %1192 = vmatprep.subr.bf16.mxu0 0
    %1193 = vmatpush2.bf16.msra.mxu0 0
    %1194 = vmatprep.subr.bf16.mxu0 0
    %1195 = vmatpush2.bf16.msra.mxu0 0
    %1196 = vmatprep.mubr.bf16.mxu0 0
    %1197 = vmatmul.mubr.bf16.gmra.mxu0 %v1162
    %v1198 = vpop.f32.mrf.mxu0
    %v1199 = vadd.f32 %v1146, %v1198
    %v1200 = vpop.f32.mrf.mxu0
    %v1201 = vpop.f32.mrf.mxu0
    %v1202 = vpop.f32.mrf.mxu0
    %1203 = vdwg.mxu0
    %v1204 = vtanh.pop %v1199
    %v1205 = vmul.f32 %v1204, 2.0
    %v1206 = vmax.f32 %v1199, 0.0
    %v1207 = vadd.f32 %v1206, 0.001
    %v1208 = vld [vmem:[%s1] sm:$0xff]
    %v1209 = vrsqrt.pop %v1207
    %v1210 = vmul.f32 %v1207, %v1209
    %vm1211 = vcmp.eq.f32.partialorder %v1207, inf
    %v1212 = vsel %vm1211, %v1207, %v1210
    %vm1213 = vcmp.eq.f32.partialorder %v1207, 0.0
    %v1214 = vand.u32 %v1207, 2147483648
    %v1215 = vsel %vm1213, %v1214, %v1212
    %1217 = vrot.lane.b32.xlu0 %v1208, 1
    %v1218 = vpop.permute.xlu0 %1217
    %v1220 = vmul.f32 %v1215, %v1218
    %1222 = vrot.lane.b32.xlu0 %v1220, 127
    %v1223 = vpop.permute.xlu0 %1222
    %v1225 = vadd.f32 %v1205, %v1223
    %v1226 = vlog2.pop %v1207
    %v1227 = vmul.f32 %v1226, 0.6931472
    %v1228 = vmul.f32 %v1208, -0.5
    %v1229 = vmul.f32 %v1228, %v1208
    %v1230 = vsub.f32 %v1229, 0.9189385
    %v1231 = vmul.f32 %v1227, 0.5
    %1233 = vrot.lane.b32.xlu0 %v1231, 127
    %v1234 = vpop.permute.xlu0 %1233
    %v1236 = vsub.f32 %v1230, %v1234
    %v1237 = vadd.f32 %v1227, 2.837877
    %v1238 = vmul.f32 %v1237, 0.5
    %vm1239 = vcmask 15368
    %v1240 = vsel %vm1239, %v1238, 0.0
    %v1241 = vrot.slane %v1240, 4
    %v1242 = vadd.f32 %v1240, %v1241
    %v1243 = vrot.slane %v1242, 2
    %v1244 = vadd.f32 %v1242, %v1243
    %v1245 = vrot.slane %v1244, 1
    %v1246 = vadd.f32 %v1244, %v1245
    %v1247 = vrcp.pop 8.0
    %v1248 = vmul.f32 %v1246, %v1247
    %v1249 = vmax.f32 %v1225, -0.5
    %v1250 = vmin.f32 %v1249, 0.8
    %v1251 = vlaneseq
    %v1252 = vand.u32 %v1251, 127
    %vm1253 = vcmp.eq.s32.totalorder %v1252, 0
    %1255 = vset.pattern.permute.xlu0 0
    %1256 = vperm.xlu0 %1255, %v1250
    %v1257 = vpop.permute.xlu0 %1256
    %v1259 = vsel %vm1253, %v1257, 0.0
    %vm1260 = vcmp.eq.s32.totalorder %v1252, 1
    %1262 = vset.pattern.permute.xlu0 0
    %1263 = vperm.xlu0 %1262, %v1236
    %v1264 = vpop.permute.xlu0 %1263
    %v1266 = vsel %vm1260, %v1264, %v1259
    %vm1267 = vcmp.eq.s32.totalorder %v1252, 2
    %1269 = vset.pattern.permute.xlu0 1
    %1270 = vperm.xlu0 %1269, %v1248
    %v1271 = vpop.permute.xlu0 %1270
    %v1273 = vsel %vm1267, %v1271, %v1266
    %1274 = vst [vmem:[%s4] sm:$0xff] %v1273
    // Predicated region
    $region22: #{actor_forward.1} parent=1 // pred_check
      _
    $region23: #{actor_forward.1} parent=1 // pred_check_branch
      %1276 = sbr.rel (0) target = $region25
    $region24: #{actor_forward.1} parent=1 // pred_region
      _
    $region25: #{actor_forward.1} parent=1 // pred_fallthru
      _
    // Predicated region
    $region26: #{actor_forward.1} parent=1 // pred_check
      _
    $region27: #{actor_forward.1} parent=1 // pred_check_branch
      %1278 = sbr.rel (0) target = $region29
    $region28: #{actor_forward.1} parent=1 // pred_region
      _
    $region29: #{actor_forward.1} parent=1 // pred_fallthru
      _
    %1279 = vsyncpa [#allocation3], 1

</llo_original>
